<compile_context>
chip_gen: v7x
topology: tpu7x:2x2x1
jax: 0.10.0
libtpu: 0.0.40
codegen_flags: <defaults>
</compile_context>

<pallas_src>
import math

import jax
import jax.numpy as jnp
from jax.experimental import pallas as pl
from jax.experimental.pallas import tpu as pltpu

BN_EPS = 1e-5        # nn.BatchNorm2d default eps
DENORM_THR = 1e-5    # replace_denormals threshold


# --------------------------------------------------------------------------
# Pallas kernels
# --------------------------------------------------------------------------
def fc_bn_kernel(x_ref, w1_ref, w2_ref, g1_ref, b1_ref, g2_ref, b2_ref, o_ref):
    """self.fc on (B, C, N) with N = H*W as the (dense) lane dimension.

    conv1x1 -> BN(train stats) -> ReLU -> conv1x1 -> BN(train stats).
    Weights are (out_ch, in_ch); they are broadcast over the tiny batch dim so
    the contraction over channels is a batched matmul whose output keeps N in
    the lanes.
    # TODO(synk): if this kernel is ever tiled over B*H*W for large inputs, the
    # BatchNorm must become a two-pass (accumulate stats, then normalize)
    # scheme; un-gridded here so the global batch statistics stay exact.
    """
    x = x_ref[...]                                   # (B, C, N)
    b = x.shape[0]

    w1 = jnp.broadcast_to(w1_ref[...][None], (b,) + w1_ref.shape)   # (B, Cr, C)
    h = jax.lax.dot_general(w1, x,
                            dimension_numbers=(((2,), (1,)), ((0,), (0,))),
                            preferred_element_type=jnp.float32)     # (B, Cr, N)
    mu = jnp.mean(jnp.mean(h, axis=2, keepdims=True), axis=0, keepdims=True)
    var = jnp.mean(jnp.mean((h - mu) ** 2, axis=2, keepdims=True),
                   axis=0, keepdims=True)
    h = (h - mu) * jax.lax.rsqrt(var + BN_EPS) * g1_ref[...][None] + b1_ref[...][None]
    h = jnp.maximum(h, 0.0)

    w2 = jnp.broadcast_to(w2_ref[...][None], (b,) + w2_ref.shape)   # (B, C, Cr)
    z = jax.lax.dot_general(w2, h,
                            dimension_numbers=(((2,), (1,)), ((0,), (0,))),
                            preferred_element_type=jnp.float32)     # (B, C, N)
    mu2 = jnp.mean(jnp.mean(z, axis=2, keepdims=True), axis=0, keepdims=True)
    var2 = jnp.mean(jnp.mean((z - mu2) ** 2, axis=2, keepdims=True),
                    axis=0, keepdims=True)
    o_ref[...] = (z - mu2) * jax.lax.rsqrt(var2 + BN_EPS) * g2_ref[...][None] \
        + b2_ref[...][None]


def spectral_kernel(w_ref, x_ref, xa_ref, fr_ref, fi_ref, gr_ref, gi_ref,
                    y_ref, re_ref, im_ref):
    """decompose(x), decompose(x_adapt), amp mix, compose(phase_ori, amp).

    x_ref / xa_ref: (tile_m, H*W) lane-dense rows (one row per image).
    fft2(norm='backward') is a single matmul against the fused (HW,HW) cos/sin
    matrices FR/FI; irfft2(s=(H,W), norm='ortho') of the half-spectrum is a
    single matmul against the fused real-synthesis matrices GR/GI (rows with
    W-frequency > W//2 are zero, matching torch's trimming to W//2+1 bins).
    cos/sin of the phase are computed algebraically (re/|z|, im/|z|); the raw
    (denormal-replaced) real part and the imaginary part are exported so the
    wrapper can assemble phase_ori.
    """
    thr = DENORM_THR
    hw = x_ref.shape[1]
    inv_sqrt_hw = 1.0 / math.sqrt(hw)                # compose(): / sqrt(H*W)

    def repl(v):  # replace_denormals
        return jnp.where((v < thr) & (v > -thr), thr, v)

    FR = fr_ref[...]
    FI = fi_ref[...]

    # adapted branch first: only its amplitude is needed, so ar/ai die early.
    xa = xa_ref[...]
    ar = jnp.dot(xa, FR, preferred_element_type=jnp.float32)
    ai = jnp.dot(xa, FI, preferred_element_type=jnp.float32)
    amp_ad = jnp.sqrt(repl(ar * ar + ai * ai))

    x = x_ref[...]
    pr = jnp.dot(x, FR, preferred_element_type=jnp.float32)
    pi = jnp.dot(x, FI, preferred_element_type=jnp.float32)
    amp_ori = jnp.sqrt(repl(pr * pr + pi * pi))

    w = w_ref[...]                                   # (1, 2) mixing weights
    amp = amp_ad * w[:, 0:1] + amp_ori * w[:, 1:2]

    pr_dn = repl(pr)
    inv_mag = jax.lax.rsqrt(pr_dn * pr_dn + pi * pi)
    zr = pr_dn * inv_mag * amp * inv_sqrt_hw         # cos(phase_ori) * amp / sqrt(HW)
    zi = pi * inv_mag * amp * inv_sqrt_hw            # sin(phase_ori) * amp / sqrt(HW)

    y_ref[...] = (jnp.dot(zr, gr_ref[...], preferred_element_type=jnp.float32)
                  + jnp.dot(zi, gi_ref[...], preferred_element_type=jnp.float32))
    re_ref[...] = pr_dn
    im_ref[...] = pi


# --------------------------------------------------------------------------
# DFT helper matrices (plain-JAX glue; constants of the call)
# --------------------------------------------------------------------------
def dft_mats(n):
    idx = jnp.arange(n)
    ang = 2.0 * jnp.pi * ((idx[:, None] * idx[None, :]) % n).astype(jnp.float32) / n
    return jnp.cos(ang), jnp.sin(ang)


def irfft_mats(n):
    """Real synthesis matrices for irfft (ortho) along an axis of length n."""
    k = jnp.arange(n)
    kk, mm = k[:, None], k[None, :]
    ang = 2.0 * jnp.pi * ((kk * mm) % n).astype(jnp.float32) / n
    is_edge = (kk == 0)
    if n % 2 == 0:
        is_edge = is_edge | (kk == n // 2)
    coef = jnp.where(is_edge, 1.0, 2.0)
    valid = (kk <= n // 2).astype(jnp.float32)   # only first n//2+1 bins are used
    rr = valid * coef * jnp.cos(ang) / math.sqrt(n)
    ri = jnp.where(is_edge, 0.0, valid * (-coef) * jnp.sin(ang) / math.sqrt(n))
    return rr.astype(jnp.float32), ri.astype(jnp.float32)


def fused_dft_mats(H, W):
    """Fuse the separable H/W DFT & irfft(ortho) stages into (HW, HW) matrices."""
    CH, SH = dft_mats(H)
    CW, SW = dft_mats(W)
    RR, RI = irfft_mats(W)
    HW = H * W
    # forward fft2 (norm='backward'):  spec = x_flat @ (FR + i*FI)
    FR = (jnp.einsum('hk,wl->hwkl', CH, CW)
          - jnp.einsum('hk,wl->hwkl', SH, SW)).reshape(HW, HW)
    FI = -(jnp.einsum('hk,wl->hwkl', SH, CW)
           + jnp.einsum('hk,wl->hwkl', CH, SW)).reshape(HW, HW)
    # inverse: ifft along H (1/sqrt(H)) fused with real half-spectrum synthesis
    # along W (RR/RI already carry 1/sqrt(W), Hermitian coeffs and bin trimming).
    hscale = 1.0 / math.sqrt(H)
    GR = ((jnp.einsum('kh,lw->klhw', CH, RR)
           + jnp.einsum('kh,lw->klhw', SH, RI)) * hscale).reshape(HW, HW)
    GI = ((jnp.einsum('kh,lw->klhw', CH, RI)
           - jnp.einsum('kh,lw->klhw', SH, RR)) * hscale).reshape(HW, HW)
    return FR, FI, GR, GI


# --------------------------------------------------------------------------
# Forward pass (wrapper)
# --------------------------------------------------------------------------
def adapter_conv_forward(x, w1, w2, g1, b1, g2, b2, mix_logits, T=0.1, tile_m=None):
    B, C, H, W = x.shape
    HW = H * W
    M = B * C
    wmix = jax.nn.softmax(mix_logits / T).reshape(1, 2)

    vmem = pl.BlockSpec(memory_space=pltpu.MemorySpace.VMEM)

    # ---- kernel 1: self.fc on (B, C, H*W) (free reshape, no transposes) ----
    xa3 = pl.pallas_call(
        fc_bn_kernel,
        out_shape=jax.ShapeDtypeStruct((B, C, HW), jnp.float32),
        in_specs=[vmem] * 7,
        out_specs=vmem,
    )(x.reshape(B, C, HW), w1, w2, g1, b1, g2, b2)

    # ---- kernel 2: spectral path on (M, H*W), gridded over M ----
    if tile_m is None:
        tile_m = M
        for t in (512, 256, 128, 64, 32, 16, 8):
            if t <= M and M % t == 0:
                tile_m = t
                break
    assert M % tile_m == 0, "tile_m must divide B*C"

    FR, FI, GR, GI = fused_dft_mats(H, W)

    row_spec = pl.BlockSpec((tile_m, HW), lambda i: (i, 0))
    mat_spec = pl.BlockSpec((HW, HW), lambda i: (0, 0))

    y, re_dn, im = pl.pallas_call(
        spectral_kernel,
        out_shape=(jax.ShapeDtypeStruct((M, HW), jnp.float32),
                   jax.ShapeDtypeStruct((M, HW), jnp.float32),
                   jax.ShapeDtypeStruct((M, HW), jnp.float32)),
        grid=(M // tile_m,),
        in_specs=[pl.BlockSpec((1, 2), lambda i: (0, 0)),   # mixing weights
                  row_spec, row_spec,                        # x, x_adapt rows
                  mat_spec, mat_spec, mat_spec, mat_spec],   # FR, FI, GR, GI
        out_specs=(row_spec, row_spec, row_spec),
        compiler_params=pltpu.CompilerParams(
            dimension_semantics=("parallel",),
            vmem_limit_bytes=32 * 1024 * 1024),
    )(wmix, x.reshape(M, HW), xa3.reshape(M, HW), FR, FI, GR, GI)

    y = y.reshape(B, C, H, W)
    # TODO(synk): atan2 has no guaranteed Mosaic lowering; phase_ori is assembled
    # here in plain JAX from the kernel-exported (denormal-replaced) real / imag.
    phase_ori = jnp.arctan2(im, re_dn).reshape(B, C, H, W)
    return y, phase_ori


# --------------------------------------------------------------------------
# Pure-JAX reference (jnp.fft) for a numerical sanity check
# --------------------------------------------------------------------------
def reference_forward(x, w1, w2, g1, b1, g2, b2, mix_logits, T=0.1):
    B, C, H, W = x.shape
    hp = jax.lax.Precision.HIGHEST
    wmix = jax.nn.softmax(mix_logits / T)

    h = jnp.einsum('bchw,rc->brhw', x, w1, precision=hp)
    mu = jnp.mean(h, axis=(0, 2, 3), keepdims=True)
    var = jnp.mean((h - mu) ** 2, axis=(0, 2, 3), keepdims=True)
    h = (h - mu) / jnp.sqrt(var + BN_EPS) * g1.reshape(1, -1, 1, 1) + b1.reshape(1, -1, 1, 1)
    h = jnp.maximum(h, 0.0)
    z = jnp.einsum('brhw,cr->bchw', h, w2, precision=hp)
    mu2 = jnp.mean(z, axis=(0, 2, 3), keepdims=True)
    var2 = jnp.mean((z - mu2) ** 2, axis=(0, 2, 3), keepdims=True)
    xa = (z - mu2) / jnp.sqrt(var2 + BN_EPS) * g2.reshape(1, -1, 1, 1) + b2.reshape(1, -1, 1, 1)

    def repl(t):
        return jnp.where((t < DENORM_THR) & (t > -DENORM_THR), DENORM_THR, t)

    def decompose(v):
        f = jnp.fft.fft2(v, norm='backward')
        re, im = jnp.real(f), jnp.imag(f)
        amp = jnp.sqrt(repl(re * re + im * im))
        pha = jnp.arctan2(im, repl(re))
        return pha, amp

    p_o, a_o = decompose(x)
    _, a_a = decompose(xa)
    amp = a_a * wmix[0] + a_o * wmix[1]
    zc = (jnp.cos(p_o) + 1j * jnp.sin(p_o)) * amp / math.sqrt(H * W)
    y = jnp.fft.irfft2(zc[..., : W // 2 + 1], s=(H, W), norm='ortho')
    return y, p_o


# --------------------------------------------------------------------------
if __name__ == "__main__":
    B, C, H, W = 2, 8, 16, 16
    reduction = 4
    Cr = C // reduction

    key = jax.random.PRNGKey(0)
    kx, k1, k2 = jax.random.split(key, 3)
    x = jax.random.normal(kx, (B, C, H, W), dtype=jnp.float32)

    # conv1x1 weights in PyTorch (out, in, 1, 1) layout squeezed to (out, in)
    bound1 = 1.0 / math.sqrt(C)
    w1 = jax.random.uniform(k1, (Cr, C), jnp.float32, -bound1, bound1)
    bound2 = 1.0 / math.sqrt(Cr)
    w2 = jax.random.uniform(k2, (C, Cr), jnp.float32, -bound2, bound2)
    # BatchNorm affine params (PyTorch init: gamma=1, beta=0)
    g1 = jnp.ones((Cr, 1), jnp.float32)
    b1 = jnp.zeros((Cr, 1), jnp.float32)
    g2 = jnp.ones((C, 1), jnp.float32)
    b2 = jnp.zeros((C, 1), jnp.float32)
    # Adapter mixing logits (module init: nn.Parameter(torch.zeros(2)))
    mix_logits = jnp.zeros((2,), jnp.float32)

    fwd = jax.jit(adapter_conv_forward, static_argnames=("T", "tile_m"))
    y, phase = fwd(x, w1, w2, g1, b1, g2, b2, mix_logits, tile_m=8)
    jax.block_until_ready((y, phase))

    # numerical sanity check against the pure-JAX / jnp.fft reference
    y_ref, _ = jax.jit(reference_forward)(x, w1, w2, g1, b1, g2, b2, mix_logits)
    err = float(jnp.max(jnp.abs(y - y_ref)))
    assert y.shape == (B, C, H, W) and phase.shape == (B, C, H, W)
    assert bool(jnp.isfinite(y).all()) and bool(jnp.isfinite(phase).all())
    # loose bound: absorbs possible reduced-precision MXU passes for the DFT matmuls
    assert err < 5e-2, f"max abs error vs reference: {err}"
    print("KERNEL_OK")
</pallas_src>

<mosaic_0001>
module attributes {stable_mosaic.version = 11 : i64} {
  func.func @fc_bn_kernel(%arg0: memref<2x8x256xf32, #tpu.memory_space<vmem>>, %arg1: memref<2x8xf32, #tpu.memory_space<vmem>>, %arg2: memref<8x2xf32, #tpu.memory_space<vmem>>, %arg3: memref<2x1xf32, #tpu.memory_space<vmem>>, %arg4: memref<2x1xf32, #tpu.memory_space<vmem>>, %arg5: memref<8x1xf32, #tpu.memory_space<vmem>>, %arg6: memref<8x1xf32, #tpu.memory_space<vmem>>, %arg7: memref<2x8x256xf32, #tpu.memory_space<vmem>>) attributes {dimension_semantics = [], scalar_prefetch = 0 : i64, scratch_operands = 0 : i64, tpu.core_type = #tpu.core_type<tc>} {
    %c0 = arith.constant 0 : index
    %c0_0 = arith.constant 0 : index
    %c0_1 = arith.constant 0 : index
    %0 = vector.load %arg0[%c0, %c0_0, %c0_1] : memref<2x8x256xf32, #tpu.memory_space<vmem>>, vector<2x8x256xf32>
    %c0_2 = arith.constant 0 : index
    %c0_3 = arith.constant 0 : index
    %1 = vector.load %arg1[%c0_2, %c0_3] : memref<2x8xf32, #tpu.memory_space<vmem>>, vector<2x8xf32>
    %2 = vector.shape_cast %1 : vector<2x8xf32> to vector<1x2x8xf32>
    %3 = vector.shape_cast %2 : vector<1x2x8xf32> to vector<1x2x8xf32>
    %4 = vector.broadcast %3 : vector<1x2x8xf32> to vector<2x2x8xf32>
    %cst = arith.constant dense<0.000000e+00> : vector<2x2x256xf32>
    %5 = tpu.matmul %4, %0, %cst {dimension_numbers = #tpu.dot_dimension_numbers<[2], [1], [1], [2], [0, 0, 0, 1, 1, 2], [0], [0]>} : vector<2x2x8xf32>, vector<2x8x256xf32>, vector<2x2x256xf32> -> vector<2x2x256xf32>
    %cst_4 = arith.constant dense<0.000000e+00> : vector<2x2xf32>
    %6 = vector.multi_reduction <add>, %5, %cst_4 [2] : vector<2x2x256xf32> to vector<2x2xf32>
    %7 = vector.shape_cast %6 : vector<2x2xf32> to vector<2x2x1xf32>
    %cst_5 = arith.constant 2.560000e+02 : f32
    %8 = vector.broadcast %cst_5 : f32 to vector<2x2x1xf32>
    %9 = arith.divf %7, %8 : vector<2x2x1xf32>
    %cst_6 = arith.constant dense<0.000000e+00> : vector<2x1xf32>
    %10 = vector.multi_reduction <add>, %9, %cst_6 [0] : vector<2x2x1xf32> to vector<2x1xf32>
    %11 = vector.shape_cast %10 : vector<2x1xf32> to vector<1x2x1xf32>
    %cst_7 = arith.constant 2.000000e+00 : f32
    %12 = vector.broadcast %cst_7 : f32 to vector<1x2x1xf32>
    %13 = arith.divf %11, %12 : vector<1x2x1xf32>
    %14 = vector.broadcast %13 : vector<1x2x1xf32> to vector<2x2x256xf32>
    %15 = arith.subf %5, %14 : vector<2x2x256xf32>
    %16 = arith.mulf %15, %15 : vector<2x2x256xf32>
    %cst_8 = arith.constant dense<0.000000e+00> : vector<2x2xf32>
    %17 = vector.multi_reduction <add>, %16, %cst_8 [2] : vector<2x2x256xf32> to vector<2x2xf32>
    %18 = vector.shape_cast %17 : vector<2x2xf32> to vector<2x2x1xf32>
    %cst_9 = arith.constant 2.560000e+02 : f32
    %19 = vector.broadcast %cst_9 : f32 to vector<2x2x1xf32>
    %20 = arith.divf %18, %19 : vector<2x2x1xf32>
    %cst_10 = arith.constant dense<0.000000e+00> : vector<2x1xf32>
    %21 = vector.multi_reduction <add>, %20, %cst_10 [0] : vector<2x2x1xf32> to vector<2x1xf32>
    %22 = vector.shape_cast %21 : vector<2x1xf32> to vector<1x2x1xf32>
    %cst_11 = arith.constant 2.000000e+00 : f32
    %23 = vector.broadcast %cst_11 : f32 to vector<1x2x1xf32>
    %24 = arith.divf %22, %23 : vector<1x2x1xf32>
    %25 = vector.broadcast %13 : vector<1x2x1xf32> to vector<2x2x256xf32>
    %26 = arith.subf %5, %25 : vector<2x2x256xf32>
    %cst_12 = arith.constant 9.99999974E-6 : f32
    %27 = vector.broadcast %cst_12 : f32 to vector<1x2x1xf32>
    %28 = arith.addf %24, %27 : vector<1x2x1xf32>
    %29 = math.rsqrt %28 : vector<1x2x1xf32>
    %30 = vector.broadcast %29 : vector<1x2x1xf32> to vector<2x2x256xf32>
    %31 = arith.mulf %26, %30 : vector<2x2x256xf32>
    %c0_13 = arith.constant 0 : index
    %c0_14 = arith.constant 0 : index
    %32 = vector.load %arg3[%c0_13, %c0_14] : memref<2x1xf32, #tpu.memory_space<vmem>>, vector<2x1xf32>
    %33 = vector.shape_cast %32 : vector<2x1xf32> to vector<1x2x1xf32>
    %34 = vector.broadcast %33 : vector<1x2x1xf32> to vector<2x2x256xf32>
    %35 = arith.mulf %31, %34 : vector<2x2x256xf32>
    %c0_15 = arith.constant 0 : index
    %c0_16 = arith.constant 0 : index
    %36 = vector.load %arg4[%c0_15, %c0_16] : memref<2x1xf32, #tpu.memory_space<vmem>>, vector<2x1xf32>
    %37 = vector.shape_cast %36 : vector<2x1xf32> to vector<1x2x1xf32>
    %38 = vector.broadcast %37 : vector<1x2x1xf32> to vector<2x2x256xf32>
    %39 = arith.addf %35, %38 : vector<2x2x256xf32>
    %cst_17 = arith.constant 0.000000e+00 : f32
    %40 = vector.broadcast %cst_17 : f32 to vector<2x2x256xf32>
    %41 = arith.maximumf %39, %40 : vector<2x2x256xf32>
    %c0_18 = arith.constant 0 : index
    %c0_19 = arith.constant 0 : index
    %42 = vector.load %arg2[%c0_18, %c0_19] : memref<8x2xf32, #tpu.memory_space<vmem>>, vector<8x2xf32>
    %43 = vector.shape_cast %42 : vector<8x2xf32> to vector<1x8x2xf32>
    %44 = vector.shape_cast %43 : vector<1x8x2xf32> to vector<1x8x2xf32>
    %45 = vector.broadcast %44 : vector<1x8x2xf32> to vector<2x8x2xf32>
    %cst_20 = arith.constant dense<0.000000e+00> : vector<2x8x256xf32>
    %46 = tpu.matmul %45, %41, %cst_20 {dimension_numbers = #tpu.dot_dimension_numbers<[2], [1], [1], [2], [0, 0, 0, 1, 1, 2], [0], [0]>} : vector<2x8x2xf32>, vector<2x2x256xf32>, vector<2x8x256xf32> -> vector<2x8x256xf32>
    %cst_21 = arith.constant dense<0.000000e+00> : vector<2x8xf32>
    %47 = vector.multi_reduction <add>, %46, %cst_21 [2] : vector<2x8x256xf32> to vector<2x8xf32>
    %48 = vector.shape_cast %47 : vector<2x8xf32> to vector<2x8x1xf32>
    %cst_22 = arith.constant 2.560000e+02 : f32
    %49 = vector.broadcast %cst_22 : f32 to vector<2x8x1xf32>
    %50 = arith.divf %48, %49 : vector<2x8x1xf32>
    %cst_23 = arith.constant dense<0.000000e+00> : vector<8x1xf32>
    %51 = vector.multi_reduction <add>, %50, %cst_23 [0] : vector<2x8x1xf32> to vector<8x1xf32>
    %52 = vector.shape_cast %51 : vector<8x1xf32> to vector<1x8x1xf32>
    %cst_24 = arith.constant 2.000000e+00 : f32
    %53 = vector.broadcast %cst_24 : f32 to vector<1x8x1xf32>
    %54 = arith.divf %52, %53 : vector<1x8x1xf32>
    %55 = vector.broadcast %54 : vector<1x8x1xf32> to vector<2x8x256xf32>
    %56 = arith.subf %46, %55 : vector<2x8x256xf32>
    %57 = arith.mulf %56, %56 : vector<2x8x256xf32>
    %cst_25 = arith.constant dense<0.000000e+00> : vector<2x8xf32>
    %58 = vector.multi_reduction <add>, %57, %cst_25 [2] : vector<2x8x256xf32> to vector<2x8xf32>
    %59 = vector.shape_cast %58 : vector<2x8xf32> to vector<2x8x1xf32>
    %cst_26 = arith.constant 2.560000e+02 : f32
    %60 = vector.broadcast %cst_26 : f32 to vector<2x8x1xf32>
    %61 = arith.divf %59, %60 : vector<2x8x1xf32>
    %cst_27 = arith.constant dense<0.000000e+00> : vector<8x1xf32>
    %62 = vector.multi_reduction <add>, %61, %cst_27 [0] : vector<2x8x1xf32> to vector<8x1xf32>
    %63 = vector.shape_cast %62 : vector<8x1xf32> to vector<1x8x1xf32>
    %cst_28 = arith.constant 2.000000e+00 : f32
    %64 = vector.broadcast %cst_28 : f32 to vector<1x8x1xf32>
    %65 = arith.divf %63, %64 : vector<1x8x1xf32>
    %66 = vector.broadcast %54 : vector<1x8x1xf32> to vector<2x8x256xf32>
    %67 = arith.subf %46, %66 : vector<2x8x256xf32>
    %cst_29 = arith.constant 9.99999974E-6 : f32
    %68 = vector.broadcast %cst_29 : f32 to vector<1x8x1xf32>
    %69 = arith.addf %65, %68 : vector<1x8x1xf32>
    %70 = math.rsqrt %69 : vector<1x8x1xf32>
    %71 = vector.broadcast %70 : vector<1x8x1xf32> to vector<2x8x256xf32>
    %72 = arith.mulf %67, %71 : vector<2x8x256xf32>
    %c0_30 = arith.constant 0 : index
    %c0_31 = arith.constant 0 : index
    %73 = vector.load %arg5[%c0_30, %c0_31] : memref<8x1xf32, #tpu.memory_space<vmem>>, vector<8x1xf32>
    %74 = vector.shape_cast %73 : vector<8x1xf32> to vector<1x8x1xf32>
    %75 = vector.broadcast %74 : vector<1x8x1xf32> to vector<2x8x256xf32>
    %76 = arith.mulf %72, %75 : vector<2x8x256xf32>
    %c0_32 = arith.constant 0 : index
    %c0_33 = arith.constant 0 : index
    %77 = vector.load %arg6[%c0_32, %c0_33] : memref<8x1xf32, #tpu.memory_space<vmem>>, vector<8x1xf32>
    %78 = vector.shape_cast %77 : vector<8x1xf32> to vector<1x8x1xf32>
    %79 = vector.broadcast %78 : vector<1x8x1xf32> to vector<2x8x256xf32>
    %80 = arith.addf %76, %79 : vector<2x8x256xf32>
    %c0_34 = arith.constant 0 : index
    %c0_35 = arith.constant 0 : index
    %c0_36 = arith.constant 0 : index
    %81 = vector.load %arg7[%c0_34, %c0_35, %c0_36] : memref<2x8x256xf32, #tpu.memory_space<vmem>>, vector<2x8x256xf32>
    tpu.vector_store %arg7[%c0_34, %c0_35, %c0_36], %80 {strides = array<i32>} : memref<2x8x256xf32, #tpu.memory_space<vmem>>, vector<2x8x256xf32>,
    return
  }
}

module attributes {stable_mosaic.version = 11 : i64} {
  func.func @spectral_kernel(%arg0: i32, %arg1: memref<1x2xf32, #tpu.memory_space<vmem>>, %arg2: memref<8x256xf32, #tpu.memory_space<vmem>>, %arg3: memref<8x256xf32, #tpu.memory_space<vmem>>, %arg4: memref<256x256xf32, #tpu.memory_space<vmem>>, %arg5: memref<256x256xf32, #tpu.memory_space<vmem>>, %arg6: memref<256x256xf32, #tpu.memory_space<vmem>>, %arg7: memref<256x256xf32, #tpu.memory_space<vmem>>, %arg8: memref<8x256xf32, #tpu.memory_space<vmem>>, %arg9: memref<8x256xf32, #tpu.memory_space<vmem>>, %arg10: memref<8x256xf32, #tpu.memory_space<vmem>>) attributes {dimension_semantics = [#tpu.dimension_semantics<parallel>], iteration_bounds = array<i64: 2>, scalar_prefetch = 0 : i64, scratch_operands = 0 : i64, tpu.core_type = #tpu.core_type<tc>, window_params = [{pipeline_mode = #tpu.pipeline_mode<synchronous>, transform_indices = @transform_0, window_bounds = array<i64: 1, 2>}, {transform_indices = @transform_1, window_bounds = array<i64: 8, 256>}, {transform_indices = @transform_2, window_bounds = array<i64: 8, 256>}, {pipeline_mode = #tpu.pipeline_mode<synchronous>, transform_indices = @transform_3, window_bounds = array<i64: 256, 256>}, {pipeline_mode = #tpu.pipeline_mode<synchronous>, transform_indices = @transform_4, window_bounds = array<i64: 256, 256>}, {pipeline_mode = #tpu.pipeline_mode<synchronous>, transform_indices = @transform_5, window_bounds = array<i64: 256, 256>}, {pipeline_mode = #tpu.pipeline_mode<synchronous>, transform_indices = @transform_6, window_bounds = array<i64: 256, 256>}, {transform_indices = @transform_7, window_bounds = array<i64: 8, 256>}, {transform_indices = @transform_8, window_bounds = array<i64: 8, 256>}, {transform_indices = @transform_9, window_bounds = array<i64: 8, 256>}]} {
    %c0 = arith.constant 0 : index
    %c0_0 = arith.constant 0 : index
    %0 = vector.load %arg4[%c0, %c0_0] : memref<256x256xf32, #tpu.memory_space<vmem>>, vector<256x256xf32>
    %c0_1 = arith.constant 0 : index
    %c0_2 = arith.constant 0 : index
    %1 = vector.load %arg5[%c0_1, %c0_2] : memref<256x256xf32, #tpu.memory_space<vmem>>, vector<256x256xf32>
    %c0_3 = arith.constant 0 : index
    %c0_4 = arith.constant 0 : index
    %2 = vector.load %arg3[%c0_3, %c0_4] : memref<8x256xf32, #tpu.memory_space<vmem>>, vector<8x256xf32>
    %cst = arith.constant dense<0.000000e+00> : vector<8x256xf32>
    %3 = tpu.matmul %2, %0, %cst {dimension_numbers = #tpu.dot_dimension_numbers<[1], [0], [0], [1], [0, 0, 1, 1], [], []>} : vector<8x256xf32>, vector<256x256xf32>, vector<8x256xf32> -> vector<8x256xf32>
    %cst_5 = arith.constant dense<0.000000e+00> : vector<8x256xf32>
    %4 = tpu.matmul %2, %1, %cst_5 {dimension_numbers = #tpu.dot_dimension_numbers<[1], [0], [0], [1], [0, 0, 1, 1], [], []>} : vector<8x256xf32>, vector<256x256xf32>, vector<8x256xf32> -> vector<8x256xf32>
    %5 = arith.mulf %3, %3 : vector<8x256xf32>
    %6 = arith.mulf %4, %4 : vector<8x256xf32>
    %7 = arith.addf %5, %6 : vector<8x256xf32>
    %cst_6 = arith.constant 9.99999974E-6 : f32
    %8 = vector.broadcast %cst_6 : f32 to vector<8x256xf32>
    %9 = arith.cmpf olt, %7, %8 : vector<8x256xf32>
    %cst_7 = arith.constant -9.99999974E-6 : f32
    %10 = vector.broadcast %cst_7 : f32 to vector<8x256xf32>
    %11 = arith.cmpf ogt, %7, %10 : vector<8x256xf32>
    %12 = arith.andi %9, %11 : vector<8x256xi1>
    %cst_8 = arith.constant 9.99999974E-6 : f32
    %13 = vector.broadcast %cst_8 : f32 to vector<8x256xf32>
    %14 = arith.select %12, %13, %7 : vector<8x256xi1>, vector<8x256xf32>
    %15 = math.sqrt %14 : vector<8x256xf32>
    %c0_9 = arith.constant 0 : index
    %c0_10 = arith.constant 0 : index
    %16 = vector.load %arg2[%c0_9, %c0_10] : memref<8x256xf32, #tpu.memory_space<vmem>>, vector<8x256xf32>
    %cst_11 = arith.constant dense<0.000000e+00> : vector<8x256xf32>
    %17 = tpu.matmul %16, %0, %cst_11 {dimension_numbers = #tpu.dot_dimension_numbers<[1], [0], [0], [1], [0, 0, 1, 1], [], []>} : vector<8x256xf32>, vector<256x256xf32>, vector<8x256xf32> -> vector<8x256xf32>
    %cst_12 = arith.constant dense<0.000000e+00> : vector<8x256xf32>
    %18 = tpu.matmul %16, %1, %cst_12 {dimension_numbers = #tpu.dot_dimension_numbers<[1], [0], [0], [1], [0, 0, 1, 1], [], []>} : vector<8x256xf32>, vector<256x256xf32>, vector<8x256xf32> -> vector<8x256xf32>
    %19 = arith.mulf %17, %17 : vector<8x256xf32>
    %20 = arith.mulf %18, %18 : vector<8x256xf32>
    %21 = arith.addf %19, %20 : vector<8x256xf32>
    %cst_13 = arith.constant 9.99999974E-6 : f32
    %22 = vector.broadcast %cst_13 : f32 to vector<8x256xf32>
    %23 = arith.cmpf olt, %21, %22 : vector<8x256xf32>
    %cst_14 = arith.constant -9.99999974E-6 : f32
    %24 = vector.broadcast %cst_14 : f32 to vector<8x256xf32>
    %25 = arith.cmpf ogt, %21, %24 : vector<8x256xf32>
    %26 = arith.andi %23, %25 : vector<8x256xi1>
    %cst_15 = arith.constant 9.99999974E-6 : f32
    %27 = vector.broadcast %cst_15 : f32 to vector<8x256xf32>
    %28 = arith.select %26, %27, %21 : vector<8x256xi1>, vector<8x256xf32>
    %29 = math.sqrt %28 : vector<8x256xf32>
    %c0_16 = arith.constant 0 : index
    %c0_17 = arith.constant 0 : index
    %30 = vector.load %arg1[%c0_16, %c0_17] : memref<1x2xf32, #tpu.memory_space<vmem>>, vector<1x2xf32>
    %31 = vector.extract_strided_slice %30 {offsets = [0, 0], sizes = [1, 1], strides = [1, 1]} : vector<1x2xf32> to vector<1x1xf32>
    %32 = vector.broadcast %31 : vector<1x1xf32> to vector<8x256xf32>
    %33 = arith.mulf %15, %32 : vector<8x256xf32>
    %34 = vector.extract_strided_slice %30 {offsets = [0, 1], sizes = [1, 1], strides = [1, 1]} : vector<1x2xf32> to vector<1x1xf32>
    %35 = vector.broadcast %34 : vector<1x1xf32> to vector<8x256xf32>
    %36 = arith.mulf %29, %35 : vector<8x256xf32>
    %37 = arith.addf %33, %36 : vector<8x256xf32>
    %cst_18 = arith.constant 9.99999974E-6 : f32
    %38 = vector.broadcast %cst_18 : f32 to vector<8x256xf32>
    %39 = arith.cmpf olt, %17, %38 : vector<8x256xf32>
    %cst_19 = arith.constant -9.99999974E-6 : f32
    %40 = vector.broadcast %cst_19 : f32 to vector<8x256xf32>
    %41 = arith.cmpf ogt, %17, %40 : vector<8x256xf32>
    %42 = arith.andi %39, %41 : vector<8x256xi1>
    %cst_20 = arith.constant 9.99999974E-6 : f32
    %43 = vector.broadcast %cst_20 : f32 to vector<8x256xf32>
    %44 = arith.select %42, %43, %17 : vector<8x256xi1>, vector<8x256xf32>
    %45 = arith.mulf %44, %44 : vector<8x256xf32>
    %46 = arith.mulf %18, %18 : vector<8x256xf32>
    %47 = arith.addf %45, %46 : vector<8x256xf32>
    %48 = math.rsqrt %47 : vector<8x256xf32>
    %49 = arith.mulf %44, %48 : vector<8x256xf32>
    %50 = arith.mulf %49, %37 : vector<8x256xf32>
    %cst_21 = arith.constant 6.250000e-02 : f32
    %51 = vector.broadcast %cst_21 : f32 to vector<8x256xf32>
    %52 = arith.mulf %50, %51 : vector<8x256xf32>
    %53 = arith.mulf %18, %48 : vector<8x256xf32>
    %54 = arith.mulf %53, %37 : vector<8x256xf32>
    %cst_22 = arith.constant 6.250000e-02 : f32
    %55 = vector.broadcast %cst_22 : f32 to vector<8x256xf32>
    %56 = arith.mulf %54, %55 : vector<8x256xf32>
    %c0_23 = arith.constant 0 : index
    %c0_24 = arith.constant 0 : index
    %57 = vector.load %arg6[%c0_23, %c0_24] : memref<256x256xf32, #tpu.memory_space<vmem>>, vector<256x256xf32>
    %cst_25 = arith.constant dense<0.000000e+00> : vector<8x256xf32>
    %58 = tpu.matmul %52, %57, %cst_25 {dimension_numbers = #tpu.dot_dimension_numbers<[1], [0], [0], [1], [0, 0, 1, 1], [], []>} : vector<8x256xf32>, vector<256x256xf32>, vector<8x256xf32> -> vector<8x256xf32>
    %c0_26 = arith.constant 0 : index
    %c0_27 = arith.constant 0 : index
    %59 = vector.load %arg7[%c0_26, %c0_27] : memref<256x256xf32, #tpu.memory_space<vmem>>, vector<256x256xf32>
    %cst_28 = arith.constant dense<0.000000e+00> : vector<8x256xf32>
    %60 = tpu.matmul %56, %59, %cst_28 {dimension_numbers = #tpu.dot_dimension_numbers<[1], [0], [0], [1], [0, 0, 1, 1], [], []>} : vector<8x256xf32>, vector<256x256xf32>, vector<8x256xf32> -> vector<8x256xf32>
    %61 = arith.addf %58, %60 : vector<8x256xf32>
    %c0_29 = arith.constant 0 : index
    %c0_30 = arith.constant 0 : index
    %62 = vector.load %arg8[%c0_29, %c0_30] : memref<8x256xf32, #tpu.memory_space<vmem>>, vector<8x256xf32>
    tpu.vector_store %arg8[%c0_29, %c0_30], %61 {strides = array<i32>} : memref<8x256xf32, #tpu.memory_space<vmem>>, vector<8x256xf32>,
    %c0_31 = arith.constant 0 : index
    %c0_32 = arith.constant 0 : index
    %63 = vector.load %arg9[%c0_31, %c0_32] : memref<8x256xf32, #tpu.memory_space<vmem>>, vector<8x256xf32>
    tpu.vector_store %arg9[%c0_31, %c0_32], %44 {strides = array<i32>} : memref<8x256xf32, #tpu.memory_space<vmem>>, vector<8x256xf32>,
    %c0_33 = arith.constant 0 : index
    %c0_34 = arith.constant 0 : index
    %64 = vector.load %arg10[%c0_33, %c0_34] : memref<8x256xf32, #tpu.memory_space<vmem>>, vector<8x256xf32>
    tpu.vector_store %arg10[%c0_33, %c0_34], %18 {strides = array<i32>} : memref<8x256xf32, #tpu.memory_space<vmem>>, vector<8x256xf32>,
    return
  }
  func.func @transform_0(%arg0: i32) -> (i32, i32) {
    %c0_i32 = arith.constant 0 : i32
    %c0_i32_0 = arith.constant 0 : i32
    %c0_i32_1 = arith.constant 0 : i32
    return %c0_i32, %c0_i32_0 : i32, i32
  }
  func.func @transform_1(%arg0: i32) -> (i32, i32) {
    %c0_i32 = arith.constant 0 : i32
    %c0_i32_0 = arith.constant 0 : i32
    return %arg0, %c0_i32 : i32, i32
  }
  func.func @transform_2(%arg0: i32) -> (i32, i32) {
    %c0_i32 = arith.constant 0 : i32
    %c0_i32_0 = arith.constant 0 : i32
    return %arg0, %c0_i32 : i32, i32
  }
  func.func @transform_3(%arg0: i32) -> (i32, i32) {
    %c0_i32 = arith.constant 0 : i32
    %c0_i32_0 = arith.constant 0 : i32
    %c0_i32_1 = arith.constant 0 : i32
    return %c0_i32, %c0_i32_0 : i32, i32
  }
  func.func @transform_4(%arg0: i32) -> (i32, i32) {
    %c0_i32 = arith.constant 0 : i32
    %c0_i32_0 = arith.constant 0 : i32
    %c0_i32_1 = arith.constant 0 : i32
    return %c0_i32, %c0_i32_0 : i32, i32
  }
  func.func @transform_5(%arg0: i32) -> (i32, i32) {
    %c0_i32 = arith.constant 0 : i32
    %c0_i32_0 = arith.constant 0 : i32
    %c0_i32_1 = arith.constant 0 : i32
    return %c0_i32, %c0_i32_0 : i32, i32
  }
  func.func @transform_6(%arg0: i32) -> (i32, i32) {
    %c0_i32 = arith.constant 0 : i32
    %c0_i32_0 = arith.constant 0 : i32
    %c0_i32_1 = arith.constant 0 : i32
    return %c0_i32, %c0_i32_0 : i32, i32
  }
  func.func @transform_7(%arg0: i32) -> (i32, i32) {
    %c0_i32 = arith.constant 0 : i32
    %c0_i32_0 = arith.constant 0 : i32
    return %arg0, %c0_i32 : i32, i32
  }
  func.func @transform_8(%arg0: i32) -> (i32, i32) {
    %c0_i32 = arith.constant 0 : i32
    %c0_i32_0 = arith.constant 0 : i32
    return %arg0, %c0_i32 : i32, i32
  }
  func.func @transform_9(%arg0: i32) -> (i32, i32) {
    %c0_i32 = arith.constant 0 : i32
    %c0_i32_0 = arith.constant 0 : i32
    return %arg0, %c0_i32 : i32, i32
  }
}

</mosaic_0001>

<llo_original>
// kernel: adapter_conv_forward.2
$region0: #{adapter_conv_forward.2}
  #allocation0 [shape = 'u32[]', space=smem, size = 0x4, offset = 0x4, fixed_abs, tag = 'smem constant byte address 0x4 - core index']
  #allocation1 [shape = 'u32[144,128]{1,0:T(1,128)}', space=vmem, size = 0x12000, scoped, tag = 'internal scratch']
  %s0 = inlined_call_operand.vmem [shape: f32[2,8,256], index: 0, kind: input, shape index: {}]
  %s1 = inlined_call_operand.vmem [shape: f32[2,8], index: 1, kind: input, shape index: {}]
  %s2 = inlined_call_operand.vmem [shape: f32[8,2], index: 2, kind: input, shape index: {}]
  %s3 = inlined_call_operand.vmem [shape: f32[2,1], index: 3, kind: input, shape index: {}]
  %s4 = inlined_call_operand.vmem [shape: f32[2,1], index: 4, kind: input, shape index: {}]
  %s5 = inlined_call_operand.vmem [shape: f32[8,1], index: 5, kind: input, shape index: {}]
  %s6 = inlined_call_operand.vmem [shape: f32[8,1], index: 6, kind: input, shape index: {}]
  %s7 = inlined_call_operand.vmem [shape: f32[2,8,256], index: 7, kind: output, shape index: {}]
  %s8 = sld [smem:[#allocation0]]
  $region38: #{adapter_conv_forward.2} parent=0
    _
  %s10 = ssub.s32 1, %s8
  %s11 = scalar_select 0, %s10, %s8
  // Predicated region
  $region2: #{adapter_conv_forward.2} parent=0 // pred_check
    _
  $region3: #{adapter_conv_forward.2} parent=0 // pred_check_branch
    %13 = sbr.rel (0) target = $region5
  $region4: #{adapter_conv_forward.2} parent=0 // pred_region
    _
  $region5: #{adapter_conv_forward.2} parent=0 // pred_fallthru
    _
  // Predicated region
  $region6: #{adapter_conv_forward.2} parent=0 // pred_check
    _
  $region7: #{adapter_conv_forward.2} parent=0 // pred_check_branch
    %15 = sbr.rel (0) target = $region9
  $region8: #{adapter_conv_forward.2} parent=0 // pred_region
    _
  $region9: #{adapter_conv_forward.2} parent=0 // pred_fallthru
    _
  // Predicated region
  $region10: #{adapter_conv_forward.2} parent=0 // pred_check
    _
  $region11: #{adapter_conv_forward.2} parent=0 // pred_check_branch
    %17 = sbr.rel (0) target = $region13
  $region12: #{adapter_conv_forward.2} parent=0 // pred_region
    _
  $region13: #{adapter_conv_forward.2} parent=0 // pred_fallthru
    _
  // Predicated region
  $region14: #{adapter_conv_forward.2} parent=0 // pred_check
    _
  $region15: #{adapter_conv_forward.2} parent=0 // pred_check_branch
    %19 = sbr.rel (0) target = $region17
  $region16: #{adapter_conv_forward.2} parent=0 // pred_region
    _
  $region17: #{adapter_conv_forward.2} parent=0 // pred_fallthru
    _
  // Predicated region
  $region18: #{adapter_conv_forward.2} parent=0 // pred_check
    _
  $region19: #{adapter_conv_forward.2} parent=0 // pred_check_branch
    %21 = sbr.rel (0) target = $region21
  $region20: #{adapter_conv_forward.2} parent=0 // pred_region
    _
  $region21: #{adapter_conv_forward.2} parent=0 // pred_fallthru
    _
  // Predicated region
  $region22: #{adapter_conv_forward.2} parent=0 // pred_check
    _
  $region23: #{adapter_conv_forward.2} parent=0 // pred_check_branch
    %23 = sbr.rel (0) target = $region25
  $region24: #{adapter_conv_forward.2} parent=0 // pred_region
    _
  $region25: #{adapter_conv_forward.2} parent=0 // pred_fallthru
    _
  // Predicated region
  $region26: #{adapter_conv_forward.2} parent=0 // pred_check
    _
  $region27: #{adapter_conv_forward.2} parent=0 // pred_check_branch
    %25 = sbr.rel (0) target = $region29
  $region28: #{adapter_conv_forward.2} parent=0 // pred_region
    _
  $region29: #{adapter_conv_forward.2} parent=0 // pred_fallthru
    _
  %v26 = vld [vmem:[%s0] sm:$0xff]
  %v27 = vld [vmem:[%s0 + $0x8] sm:$0xff]
  %v28 = vld [vmem:[%s0 + $0x10] sm:$0xff]
  %v29 = vld [vmem:[%s0 + $0x18] sm:$0xff]
  %v30 = vld [vmem:[%s1] sm:$0x3]
  %vm31 = vcmask 64512
  %v33 = vsel %vm31, %v30, 0
  %35 = vmatprep.subr.mxu0 %v27
  %36 = vmatpush1.msra.mxu0 %v26
  %37 = vmatprep.subr.mxu0 0.0
  %38 = vmatpush1.msra.mxu0 0.0
  %39 = vmatprep.subr.mxu0 0.0
  %40 = vmatpush1.msra.mxu0 0.0
  %41 = vmatprep.subr.mxu0 0.0
  %42 = vmatpush1.msra.mxu0 0.0
  %43 = vmatprep.subr.mxu0 0.0
  %44 = vmatpush1.msra.mxu0 0.0
  %45 = vmatprep.subr.mxu0 0.0
  %46 = vmatpush1.msra.mxu0 0.0
  %47 = vmatprep.subr.mxu0 0.0
  %48 = vmatpush1.msra.mxu0 0.0
  %49 = vmatprep.subr.mxu0 0.0
  %50 = vmatpush1.msra.mxu0 0.0
  %51 = vmatprep.subr.mxu0 0.0
  %52 = vmatpush1.msra.mxu0 0.0
  %53 = vmatprep.subr.mxu0 0.0
  %54 = vmatpush1.msra.mxu0 0.0
  %55 = vmatprep.subr.mxu0 0.0
  %56 = vmatpush1.msra.mxu0 0.0
  %57 = vmatprep.subr.mxu0 0.0
  %58 = vmatpush1.msra.mxu0 0.0
  %59 = vmatprep.subr.mxu0 0.0
  %60 = vmatpush1.msra.mxu0 0.0
  %61 = vmatprep.subr.mxu0 0.0
  %62 = vmatpush1.msra.mxu0 0.0
  %63 = vmatprep.subr.mxu0 0.0
  %64 = vmatpush1.msra.mxu0 0.0
  %65 = vmatprep.subr.mxu0 0.0
  %66 = vmatpush1.msra.mxu0 0.0
  %67 = vmatprep.subr.mxu0 0.0
  %68 = vmatpush1.msra.mxu0 0.0
  %69 = vmatprep.subr.mxu0 0.0
  %70 = vmatpush1.msra.mxu0 0.0
  %71 = vmatprep.subr.mxu0 0.0
  %72 = vmatpush1.msra.mxu0 0.0
  %73 = vmatprep.subr.mxu0 0.0
  %74 = vmatpush1.msra.mxu0 0.0
  %75 = vmatprep.subr.mxu0 0.0
  %76 = vmatpush1.msra.mxu0 0.0
  %77 = vmatprep.subr.mxu0 0.0
  %78 = vmatpush1.msra.mxu0 0.0
  %79 = vmatprep.subr.mxu0 0.0
  %80 = vmatpush1.msra.mxu0 0.0
  %81 = vmatprep.subr.mxu0 0.0
  %82 = vmatpush1.msra.mxu0 0.0
  %83 = vmatprep.subr.mxu0 0.0
  %84 = vmatpush1.msra.mxu0 0.0
  %85 = vmatprep.subr.mxu0 0.0
  %86 = vmatpush1.msra.mxu0 0.0
  %87 = vmatprep.subr.mxu0 0.0
  %88 = vmatpush1.msra.mxu0 0.0
  %89 = vmatprep.subr.mxu0 0.0
  %90 = vmatpush1.msra.mxu0 0.0
  %91 = vmatprep.subr.mxu0 0.0
  %92 = vmatpush1.msra.mxu0 0.0
  %93 = vmatprep.subr.mxu0 0.0
  %94 = vmatpush1.msra.mxu0 0.0
  %95 = vmatprep.subr.mxu0 0.0
  %96 = vmatpush1.msra.mxu0 0.0
  %97 = vmatprep.subr.mxu0 0.0
  %98 = vmatpush1.msra.mxu0 0.0
  %99 = vmatprep.mubr.f32.mxu0 0.0
  %100 = vmatmul.mubr.f32.gmra.mrb[0].mxu0 %v33
  %v101 = vpop.f32.mrb[0].mxu0
  %v102 = vadd.f32 0.0, %v101
  %v103 = vpop.f32.mrb[0].mxu0
  %v104 = vadd.f32 0.0, %v103
  %105 = vdwg.mxu0
  %106 = vmatprep.subr.mxu0 %v29
  %107 = vmatpush1.msra.mxu0 %v28
  %108 = vmatprep.subr.mxu0 0.0
  %109 = vmatpush1.msra.mxu0 0.0
  %110 = vmatprep.subr.mxu0 0.0
  %111 = vmatpush1.msra.mxu0 0.0
  %112 = vmatprep.subr.mxu0 0.0
  %113 = vmatpush1.msra.mxu0 0.0
  %114 = vmatprep.subr.mxu0 0.0
  %115 = vmatpush1.msra.mxu0 0.0
  %116 = vmatprep.subr.mxu0 0.0
  %117 = vmatpush1.msra.mxu0 0.0
  %118 = vmatprep.subr.mxu0 0.0
  %119 = vmatpush1.msra.mxu0 0.0
  %120 = vmatprep.subr.mxu0 0.0
  %121 = vmatpush1.msra.mxu0 0.0
  %122 = vmatprep.subr.mxu0 0.0
  %123 = vmatpush1.msra.mxu0 0.0
  %124 = vmatprep.subr.mxu0 0.0
  %125 = vmatpush1.msra.mxu0 0.0
  %126 = vmatprep.subr.mxu0 0.0
  %127 = vmatpush1.msra.mxu0 0.0
  %128 = vmatprep.subr.mxu0 0.0
  %129 = vmatpush1.msra.mxu0 0.0
  %130 = vmatprep.subr.mxu0 0.0
  %131 = vmatpush1.msra.mxu0 0.0
  %132 = vmatprep.subr.mxu0 0.0
  %133 = vmatpush1.msra.mxu0 0.0
  %134 = vmatprep.subr.mxu0 0.0
  %135 = vmatpush1.msra.mxu0 0.0
  %136 = vmatprep.subr.mxu0 0.0
  %137 = vmatpush1.msra.mxu0 0.0
  %138 = vmatprep.subr.mxu0 0.0
  %139 = vmatpush1.msra.mxu0 0.0
  %140 = vmatprep.subr.mxu0 0.0
  %141 = vmatpush1.msra.mxu0 0.0
  %142 = vmatprep.subr.mxu0 0.0
  %143 = vmatpush1.msra.mxu0 0.0
  %144 = vmatprep.subr.mxu0 0.0
  %145 = vmatpush1.msra.mxu0 0.0
  %146 = vmatprep.subr.mxu0 0.0
  %147 = vmatpush1.msra.mxu0 0.0
  %148 = vmatprep.subr.mxu0 0.0
  %149 = vmatpush1.msra.mxu0 0.0
  %150 = vmatprep.subr.mxu0 0.0
  %151 = vmatpush1.msra.mxu0 0.0
  %152 = vmatprep.subr.mxu0 0.0
  %153 = vmatpush1.msra.mxu0 0.0
  %154 = vmatprep.subr.mxu0 0.0
  %155 = vmatpush1.msra.mxu0 0.0
  %156 = vmatprep.subr.mxu0 0.0
  %157 = vmatpush1.msra.mxu0 0.0
  %158 = vmatprep.subr.mxu0 0.0
  %159 = vmatpush1.msra.mxu0 0.0
  %160 = vmatprep.subr.mxu0 0.0
  %161 = vmatpush1.msra.mxu0 0.0
  %162 = vmatprep.subr.mxu0 0.0
  %163 = vmatpush1.msra.mxu0 0.0
  %164 = vmatprep.subr.mxu0 0.0
  %165 = vmatpush1.msra.mxu0 0.0
  %166 = vmatprep.subr.mxu0 0.0
  %167 = vmatpush1.msra.mxu0 0.0
  %168 = vmatprep.subr.mxu0 0.0
  %169 = vmatpush1.msra.mxu0 0.0
  %170 = vmatprep.mubr.f32.mxu0 0.0
  %171 = vmatmul.mubr.f32.gmra.mrb[0].mxu0 %v33
  %v172 = vpop.f32.mrb[0].mxu0
  %v173 = vadd.f32 0.0, %v172
  %v174 = vpop.f32.mrb[0].mxu0
  %v175 = vadd.f32 0.0, %v174
  %176 = vdwg.mxu0
  %vm177 = vcmask 1041408
  %v178 = vsel %vm177, %v102, 0.0
  %v179 = vsel %vm177, %v104, 0.0
  %v180 = vadd.f32 %v178, %v179
  %181 = vadd.xlane.f32.xlu0 %v180
  %v182 = vpop.xlane.xlu0 %181
  %v183 = vsel %vm177, %v173, 0.0
  %v184 = vsel %vm177, %v175, 0.0
  %v185 = vadd.f32 %v183, %v184
  %186 = vadd.xlane.f32.xlu0 %v185
  %v187 = vpop.xlane.xlu0 %186
  %v188 = vrcp.pop 256.0
  %v189 = vmul.f32 %v182, %v188
  %v190 = vmul.f32 %v187, %v188
  %v191 = vsel %vm177, %v189, 0.0
  %v192 = vsel %vm177, %v190, 0.0
  %v193 = vadd.f32 %v191, %v192
  %v194 = vrcp.pop 2.0
  %v195 = vmul.f32 %v193, %v194
  %v196 = vsub.f32 %v102, %v195
  %v197 = vsub.f32 %v104, %v195
  %v198 = vsub.f32 %v173, %v195
  %v199 = vsub.f32 %v175, %v195
  %v200 = vmul.f32 %v196, %v196
  %v201 = vmul.f32 %v197, %v197
  %v202 = vmul.f32 %v198, %v198
  %v203 = vmul.f32 %v199, %v199
  %v204 = vsel %vm177, %v200, 0.0
  %v205 = vsel %vm177, %v201, 0.0
  %v206 = vadd.f32 %v204, %v205
  %207 = vadd.xlane.f32.xlu0 %v206
  %v208 = vpop.xlane.xlu0 %207
  %v209 = vsel %vm177, %v202, 0.0
  %v210 = vsel %vm177, %v203, 0.0
  %v211 = vadd.f32 %v209, %v210
  %212 = vadd.xlane.f32.xlu0 %v211
  %v213 = vpop.xlane.xlu0 %212
  %v214 = vmul.f32 %v208, %v188
  %v215 = vmul.f32 %v213, %v188
  %v216 = vsel %vm177, %v214, 0.0
  %v217 = vsel %vm177, %v215, 0.0
  %v218 = vadd.f32 %v216, %v217
  %v219 = vmul.f32 %v218, %v194
  %v220 = vadd.f32 %v219, 1e-05
  %v221 = vrsqrt.pop %v220
  %v222 = vmul.f32 %v196, %v221
  %v223 = vmul.f32 %v197, %v221
  %v224 = vmul.f32 %v198, %v221
  %v225 = vmul.f32 %v199, %v221
  %v226 = vld [vmem:[%s3] sm:$0x3]
  %228 = vset.pattern.permute.xlu0 0
  %229 = vperm.xlu0 %228, %v226
  %v230 = vpop.permute.xlu0 %229
  %v232 = vmul.f32 %v222, %v230
  %v233 = vmul.f32 %v223, %v230
  %v234 = vmul.f32 %v224, %v230
  %v235 = vmul.f32 %v225, %v230
  %v236 = vld [vmem:[%s4] sm:$0x3]
  %238 = vset.pattern.permute.xlu0 0
  %239 = vperm.xlu0 %238, %v236
  %v240 = vpop.permute.xlu0 %239
  %v242 = vadd.f32 %v232, %v240
  %v243 = vadd.f32 %v233, %v240
  %v244 = vadd.f32 %v234, %v240
  %v245 = vadd.f32 %v235, %v240
  %v246 = vmax.f32 %v242, 0.0
  %v247 = vmax.f32 %v243, 0.0
  %v248 = vmax.f32 %v244, 0.0
  %v249 = vmax.f32 %v245, 0.0
  %v250 = vld [vmem:[%s2] sm:$0xff]
  %vm251 = vcmask 15360
  %v253 = vsel %vm251, %v250, 0
  %v256 = vsel %vm177, %v246, 0
  %v259 = vsel %vm177, %v247, 0
  %261 = vmatprep.subr.mxu0 %v259
  %262 = vmatpush1.msra.mxu0 %v256
  %263 = vmatprep.subr.mxu0 0.0
  %264 = vmatpush1.msra.mxu0 0.0
  %265 = vmatprep.subr.mxu0 0.0
  %266 = vmatpush1.msra.mxu0 0.0
  %267 = vmatprep.subr.mxu0 0.0
  %268 = vmatpush1.msra.mxu0 0.0
  %269 = vmatprep.subr.mxu0 0.0
  %270 = vmatpush1.msra.mxu0 0.0
  %271 = vmatprep.subr.mxu0 0.0
  %272 = vmatpush1.msra.mxu0 0.0
  %273 = vmatprep.subr.mxu0 0.0
  %274 = vmatpush1.msra.mxu0 0.0
  %275 = vmatprep.subr.mxu0 0.0
  %276 = vmatpush1.msra.mxu0 0.0
  %277 = vmatprep.subr.mxu0 0.0
  %278 = vmatpush1.msra.mxu0 0.0
  %279 = vmatprep.subr.mxu0 0.0
  %280 = vmatpush1.msra.mxu0 0.0
  %281 = vmatprep.subr.mxu0 0.0
  %282 = vmatpush1.msra.mxu0 0.0
  %283 = vmatprep.subr.mxu0 0.0
  %284 = vmatpush1.msra.mxu0 0.0
  %285 = vmatprep.subr.mxu0 0.0
  %286 = vmatpush1.msra.mxu0 0.0
  %287 = vmatprep.subr.mxu0 0.0
  %288 = vmatpush1.msra.mxu0 0.0
  %289 = vmatprep.subr.mxu0 0.0
  %290 = vmatpush1.msra.mxu0 0.0
  %291 = vmatprep.subr.mxu0 0.0
  %292 = vmatpush1.msra.mxu0 0.0
  %293 = vmatprep.subr.mxu0 0.0
  %294 = vmatpush1.msra.mxu0 0.0
  %295 = vmatprep.subr.mxu0 0.0
  %296 = vmatpush1.msra.mxu0 0.0
  %297 = vmatprep.subr.mxu0 0.0
  %298 = vmatpush1.msra.mxu0 0.0
  %299 = vmatprep.subr.mxu0 0.0
  %300 = vmatpush1.msra.mxu0 0.0
  %301 = vmatprep.subr.mxu0 0.0
  %302 = vmatpush1.msra.mxu0 0.0
  %303 = vmatprep.subr.mxu0 0.0
  %304 = vmatpush1.msra.mxu0 0.0
  %305 = vmatprep.subr.mxu0 0.0
  %306 = vmatpush1.msra.mxu0 0.0
  %307 = vmatprep.subr.mxu0 0.0
  %308 = vmatpush1.msra.mxu0 0.0
  %309 = vmatprep.subr.mxu0 0.0
  %310 = vmatpush1.msra.mxu0 0.0
  %311 = vmatprep.subr.mxu0 0.0
  %312 = vmatpush1.msra.mxu0 0.0
  %313 = vmatprep.subr.mxu0 0.0
  %314 = vmatpush1.msra.mxu0 0.0
  %315 = vmatprep.subr.mxu0 0.0
  %316 = vmatpush1.msra.mxu0 0.0
  %317 = vmatprep.subr.mxu0 0.0
  %318 = vmatpush1.msra.mxu0 0.0
  %319 = vmatprep.subr.mxu0 0.0
  %320 = vmatpush1.msra.mxu0 0.0
  %321 = vmatprep.subr.mxu0 0.0
  %322 = vmatpush1.msra.mxu0 0.0
  %323 = vmatprep.subr.mxu0 0.0
  %324 = vmatpush1.msra.mxu0 0.0
  %325 = vmatprep.mubr.f32.mxu0 0.0
  %326 = vmatmul.mubr.f32.gmra.mrb[0].mxu0 %v253
  %v327 = vpop.f32.mrb[0].mxu0
  %v328 = vadd.f32 0.0, %v327
  %v329 = vpop.f32.mrb[0].mxu0
  %v330 = vadd.f32 0.0, %v329
  %331 = vdwg.mxu0
  %v333 = vsel %vm177, %v248, 0
  %v336 = vsel %vm177, %v249, 0
  %338 = vmatprep.subr.mxu0 %v336
  %339 = vmatpush1.msra.mxu0 %v333
  %340 = vmatprep.subr.mxu0 0.0
  %341 = vmatpush1.msra.mxu0 0.0
  %342 = vmatprep.subr.mxu0 0.0
  %343 = vmatpush1.msra.mxu0 0.0
  %344 = vmatprep.subr.mxu0 0.0
  %345 = vmatpush1.msra.mxu0 0.0
  %346 = vmatprep.subr.mxu0 0.0
  %347 = vmatpush1.msra.mxu0 0.0
  %348 = vmatprep.subr.mxu0 0.0
  %349 = vmatpush1.msra.mxu0 0.0
  %350 = vmatprep.subr.mxu0 0.0
  %351 = vmatpush1.msra.mxu0 0.0
  %352 = vmatprep.subr.mxu0 0.0
  %353 = vmatpush1.msra.mxu0 0.0
  %354 = vmatprep.subr.mxu0 0.0
  %355 = vmatpush1.msra.mxu0 0.0
  %356 = vmatprep.subr.mxu0 0.0
  %357 = vmatpush1.msra.mxu0 0.0
  %358 = vmatprep.subr.mxu0 0.0
  %359 = vmatpush1.msra.mxu0 0.0
  %360 = vmatprep.subr.mxu0 0.0
  %361 = vmatpush1.msra.mxu0 0.0
  %362 = vmatprep.subr.mxu0 0.0
  %363 = vmatpush1.msra.mxu0 0.0
  %364 = vmatprep.subr.mxu0 0.0
  %365 = vmatpush1.msra.mxu0 0.0
  %366 = vmatprep.subr.mxu0 0.0
  %367 = vmatpush1.msra.mxu0 0.0
  %368 = vmatprep.subr.mxu0 0.0
  %369 = vmatpush1.msra.mxu0 0.0
  %370 = vmatprep.subr.mxu0 0.0
  %371 = vmatpush1.msra.mxu0 0.0
  %372 = vmatprep.subr.mxu0 0.0
  %373 = vmatpush1.msra.mxu0 0.0
  %374 = vmatprep.subr.mxu0 0.0
  %375 = vmatpush1.msra.mxu0 0.0
  %376 = vmatprep.subr.mxu0 0.0
  %377 = vmatpush1.msra.mxu0 0.0
  %378 = vmatprep.subr.mxu0 0.0
  %379 = vmatpush1.msra.mxu0 0.0
  %380 = vmatprep.subr.mxu0 0.0
  %381 = vmatpush1.msra.mxu0 0.0
  %382 = vmatprep.subr.mxu0 0.0
  %383 = vmatpush1.msra.mxu0 0.0
  %384 = vmatprep.subr.mxu0 0.0
  %385 = vmatpush1.msra.mxu0 0.0
  %386 = vmatprep.subr.mxu0 0.0
  %387 = vmatpush1.msra.mxu0 0.0
  %388 = vmatprep.subr.mxu0 0.0
  %389 = vmatpush1.msra.mxu0 0.0
  %390 = vmatprep.subr.mxu0 0.0
  %391 = vmatpush1.msra.mxu0 0.0
  %392 = vmatprep.subr.mxu0 0.0
  %393 = vmatpush1.msra.mxu0 0.0
  %394 = vmatprep.subr.mxu0 0.0
  %395 = vmatpush1.msra.mxu0 0.0
  %396 = vmatprep.subr.mxu0 0.0
  %397 = vmatpush1.msra.mxu0 0.0
  %398 = vmatprep.subr.mxu0 0.0
  %399 = vmatpush1.msra.mxu0 0.0
  %400 = vmatprep.subr.mxu0 0.0
  %401 = vmatpush1.msra.mxu0 0.0
  %402 = vmatprep.mubr.f32.mxu0 0.0
  %403 = vmatmul.mubr.f32.gmra.mrb[0].mxu0 %v253
  %v404 = vpop.f32.mrb[0].mxu0
  %v405 = vadd.f32 0.0, %v404
  %v406 = vpop.f32.mrb[0].mxu0
  %v407 = vadd.f32 0.0, %v406
  %408 = vdwg.mxu0
  %v409 = vadd.f32 %v328, %v330
  %410 = vadd.xlane.f32.xlu0 %v409
  %v411 = vpop.xlane.xlu0 %410
  %v412 = vadd.f32 %v405, %v407
  %413 = vadd.xlane.f32.xlu0 %v412
  %v414 = vpop.xlane.xlu0 %413
  %v415 = vmul.f32 %v411, %v188
  %v416 = vmul.f32 %v414, %v188
  %v417 = vadd.f32 %v415, %v416
  %v418 = vmul.f32 %v417, %v194
  %v419 = vsub.f32 %v328, %v418
  %v420 = vsub.f32 %v330, %v418
  %v421 = vsub.f32 %v405, %v418
  %v422 = vsub.f32 %v407, %v418
  %v423 = vmul.f32 %v419, %v419
  %v424 = vmul.f32 %v420, %v420
  %v425 = vmul.f32 %v421, %v421
  %v426 = vmul.f32 %v422, %v422
  %v427 = vadd.f32 %v423, %v424
  %428 = vadd.xlane.f32.xlu0 %v427
  %v429 = vpop.xlane.xlu0 %428
  %v430 = vadd.f32 %v425, %v426
  %431 = vadd.xlane.f32.xlu0 %v430
  %v432 = vpop.xlane.xlu0 %431
  %v433 = vmul.f32 %v429, %v188
  %v434 = vmul.f32 %v432, %v188
  %v435 = vadd.f32 %v433, %v434
  %v436 = vmul.f32 %v435, %v194
  %v437 = vadd.f32 %v436, 1e-05
  %v438 = vrsqrt.pop %v437
  %v439 = vmul.f32 %v419, %v438
  %v440 = vmul.f32 %v420, %v438
  %v441 = vmul.f32 %v421, %v438
  %v442 = vmul.f32 %v422, %v438
  %v443 = vld [vmem:[%s5] sm:$0xff]
  %445 = vset.pattern.permute.xlu0 0
  %446 = vperm.xlu0 %445, %v443
  %v447 = vpop.permute.xlu0 %446
  %v449 = vmul.f32 %v439, %v447
  %v450 = vmul.f32 %v440, %v447
  %v451 = vmul.f32 %v441, %v447
  %v452 = vmul.f32 %v442, %v447
  %v453 = vld [vmem:[%s6] sm:$0xff]
  %455 = vset.pattern.permute.xlu0 0
  %456 = vperm.xlu0 %455, %v453
  %v457 = vpop.permute.xlu0 %456
  %v459 = vadd.f32 %v449, %v457
  %v460 = vadd.f32 %v450, %v457
  %v461 = vadd.f32 %v451, %v457
  %v462 = vadd.f32 %v452, %v457
  %463 = vst [vmem:[%s7] sm:$0xff] %v459
  %464 = vst [vmem:[%s7 + $0x8] sm:$0xff] %v460
  %465 = vst [vmem:[%s7 + $0x10] sm:$0xff] %v461
  %466 = vst [vmem:[%s7 + $0x18] sm:$0xff] %v462
  // Predicated region
  $region30: #{adapter_conv_forward.2} parent=0 // pred_check
    _
  $region31: #{adapter_conv_forward.2} parent=0 // pred_check_branch
    %468 = sbr.rel (0) target = $region33
  $region32: #{adapter_conv_forward.2} parent=0 // pred_region
    _
  $region33: #{adapter_conv_forward.2} parent=0 // pred_fallthru
    _
  // Predicated region
  $region34: #{adapter_conv_forward.2} parent=0 // pred_check
    _
  $region35: #{adapter_conv_forward.2} parent=0 // pred_check_branch
    %470 = sbr.rel (0) target = $region37
  $region36: #{adapter_conv_forward.2} parent=0 // pred_region
    _
  $region37: #{adapter_conv_forward.2} parent=0 // pred_fallthru
    _

// kernel: atan2.1
$region0: #{atan2.1}
  #allocation0 [shape = 's32[1]{0}', space=sflag, size = 0x4, scoped, tag = 'scoped memory for atan2.1']
  %s0 = inlined_call_operand.vmem [shape: f32[16,256], index: 0, kind: input, shape index: {}]
  %s1 = inlined_call_operand.vmem [shape: f32[16,256], index: 1, kind: input, shape index: {}]
  %s2 = inlined_call_operand.vmem [shape: f32[16,256], index: 2, kind: output, shape index: {}]
  %v3 = vld [vmem:[%s0] sm:$0xff]
  %v4 = vld [vmem:[%s1] sm:$0xff]
  %v5 = vand.u32 2147483647, %v4
  %v6 = vand.u32 2147483647, %v3
  %v7 = vmin.f32 %v5, %v6
  %v8 = vmax.f32 %v5, %v6
  %v9 = vrcp.pop %v8
  %v10 = vmul.f32 %v7, %v9
  %v11 = vmul.f32 %v10, %v10
  %v12 = vmul.f32 0.002785687, %v11
  %v13 = vadd.f32 %v12, -0.015866
  %v14 = vmul.f32 %v13, %v11
  %v15 = vadd.f32 %v14, 0.04247222
  %v16 = vmul.f32 %v15, %v11
  %v17 = vadd.f32 %v16, -0.074975304
  %v18 = vmul.f32 %v17, %v11
  %v19 = vadd.f32 %v18, 0.1064488
  %v20 = vmul.f32 %v19, %v11
  %v21 = vadd.f32 %v20, -0.14207031
  %v22 = vmul.f32 %v21, %v11
  %v23 = vadd.f32 %v22, 0.19993454
  %v24 = vmul.f32 %v23, %v11
  %v25 = vadd.f32 %v24, -0.33333147
  %v26 = vmul.f32 %v25, %v11
  %v27 = vmul.f32 %v26, %v10
  %v28 = vadd.f32 %v27, %v10
  %vm29 = vcmp.gt.f32.partialorder %v6, %v5
  %v30 = vsub.f32 1.5707964, %v28
  %v31 = vsel %vm29, %v30, %v28
  %vm32 = vcmp.lt.f32.partialorder %v4, 0.0
  %v33 = vsub.f32 3.1415927, %v31
  %v34 = vsel %vm32, %v33, %v31
  %vm35 = vcmp.lt.s32.totalorder %v4, 0
  %v36 = vsel %vm35, 3.1415927, 0.0
  %vm37 = vcmp.eq.f32.partialorder %v3, 0.0
  %v38 = vsel %vm37, %v36, %v34
  %vm39 = vcmp.ne.f32.partialorder %v4, %v4
  %vm40 = vcmp.ne.f32.partialorder %v3, %v3
  %vm41 = vmor %vm39, %vm40
  %v42 = vsel %vm41, nan, %v38
  %vm43 = vcmp.lt.f32.partialorder %v4, 0.0
  %v44 = vsel %vm43, 2.3561945, 0.7853982
  %vm45 = vcmp.eq.s32.totalorder %v5, inf
  %vm46 = vcmp.eq.s32.totalorder %v6, inf
  %vm47 = vmand %vm45, %vm46
  %v48 = vsel %vm47, %v44, %v42
  %v49 = vand.u32 2147483647, %v48
  %v50 = vand.u32 %v3, 2147483648
  %v51 = vor.u32 %v49, %v50
  %52 = vst [vmem:[%s2] sm:$0xff] %v51
  %s53 = scalar_lea.vmem %s0, 16
  %v54 = vld [vmem:[%s53] sm:$0xff]
  %s55 = scalar_lea.vmem %s1, 16
  %v56 = vld [vmem:[%s55] sm:$0xff]
  %v57 = vand.u32 2147483647, %v56
  %v58 = vand.u32 2147483647, %v54
  %v59 = vmin.f32 %v57, %v58
  %v60 = vmax.f32 %v57, %v58
  %v61 = vrcp.pop %v60
  %v62 = vmul.f32 %v59, %v61
  %v63 = vmul.f32 %v62, %v62
  %v64 = vmul.f32 0.002785687, %v63
  %v65 = vadd.f32 %v64, -0.015866
  %v66 = vmul.f32 %v65, %v63
  %v67 = vadd.f32 %v66, 0.04247222
  %v68 = vmul.f32 %v67, %v63
  %v69 = vadd.f32 %v68, -0.074975304
  %v70 = vmul.f32 %v69, %v63
  %v71 = vadd.f32 %v70, 0.1064488
  %v72 = vmul.f32 %v71, %v63
  %v73 = vadd.f32 %v72, -0.14207031
  %v74 = vmul.f32 %v73, %v63
  %v75 = vadd.f32 %v74, 0.19993454
  %v76 = vmul.f32 %v75, %v63
  %v77 = vadd.f32 %v76, -0.33333147
  %v78 = vmul.f32 %v77, %v63
  %v79 = vmul.f32 %v78, %v62
  %v80 = vadd.f32 %v79, %v62
  %vm81 = vcmp.gt.f32.partialorder %v58, %v57
  %v82 = vsub.f32 1.5707964, %v80
  %v83 = vsel %vm81, %v82, %v80
  %vm84 = vcmp.lt.f32.partialorder %v56, 0.0
  %v85 = vsub.f32 3.1415927, %v83
  %v86 = vsel %vm84, %v85, %v83
  %vm87 = vcmp.lt.s32.totalorder %v56, 0
  %v88 = vsel %vm87, 3.1415927, 0.0
  %vm89 = vcmp.eq.f32.partialorder %v54, 0.0
  %v90 = vsel %vm89, %v88, %v86
  %vm91 = vcmp.ne.f32.partialorder %v56, %v56
  %vm92 = vcmp.ne.f32.partialorder %v54, %v54
  %vm93 = vmor %vm91, %vm92
  %v94 = vsel %vm93, nan, %v90
  %vm95 = vcmp.lt.f32.partialorder %v56, 0.0
  %v96 = vsel %vm95, 2.3561945, 0.7853982
  %vm97 = vcmp.eq.s32.totalorder %v57, inf
  %vm98 = vcmp.eq.s32.totalorder %v58, inf
  %vm99 = vmand %vm97, %vm98
  %v100 = vsel %vm99, %v96, %v94
  %v101 = vand.u32 2147483647, %v100
  %v102 = vand.u32 %v54, 2147483648
  %v103 = vor.u32 %v101, %v102
  %s104 = scalar_lea.vmem %s2, 16
  %105 = vst [vmem:[%s104] sm:$0xff] %v103
  %s106 = scalar_lea.vmem %s0, 8
  %v107 = vld [vmem:[%s106] sm:$0xff]
  %s108 = scalar_lea.vmem %s1, 8
  %v109 = vld [vmem:[%s108] sm:$0xff]
  %v110 = vand.u32 2147483647, %v109
  %v111 = vand.u32 2147483647, %v107
  %v112 = vmin.f32 %v110, %v111
  %v113 = vmax.f32 %v110, %v111
  %v114 = vrcp.pop %v113
  %v115 = vmul.f32 %v112, %v114
  %v116 = vmul.f32 %v115, %v115
  %v117 = vmul.f32 0.002785687, %v116
  %v118 = vadd.f32 %v117, -0.015866
  %v119 = vmul.f32 %v118, %v116
  %v120 = vadd.f32 %v119, 0.04247222
  %v121 = vmul.f32 %v120, %v116
  %v122 = vadd.f32 %v121, -0.074975304
  %v123 = vmul.f32 %v122, %v116
  %v124 = vadd.f32 %v123, 0.1064488
  %v125 = vmul.f32 %v124, %v116
  %v126 = vadd.f32 %v125, -0.14207031
  %v127 = vmul.f32 %v126, %v116
  %v128 = vadd.f32 %v127, 0.19993454
  %v129 = vmul.f32 %v128, %v116
  %v130 = vadd.f32 %v129, -0.33333147
  %v131 = vmul.f32 %v130, %v116
  %v132 = vmul.f32 %v131, %v115
  %v133 = vadd.f32 %v132, %v115
  %vm134 = vcmp.gt.f32.partialorder %v111, %v110
  %v135 = vsub.f32 1.5707964, %v133
  %v136 = vsel %vm134, %v135, %v133
  %vm137 = vcmp.lt.f32.partialorder %v109, 0.0
  %v138 = vsub.f32 3.1415927, %v136
  %v139 = vsel %vm137, %v138, %v136
  %vm140 = vcmp.lt.s32.totalorder %v109, 0
  %v141 = vsel %vm140, 3.1415927, 0.0
  %vm142 = vcmp.eq.f32.partialorder %v107, 0.0
  %v143 = vsel %vm142, %v141, %v139
  %vm144 = vcmp.ne.f32.partialorder %v109, %v109
  %vm145 = vcmp.ne.f32.partialorder %v107, %v107
  %vm146 = vmor %vm144, %vm145
  %v147 = vsel %vm146, nan, %v143
  %vm148 = vcmp.lt.f32.partialorder %v109, 0.0
  %v149 = vsel %vm148, 2.3561945, 0.7853982
  %vm150 = vcmp.eq.s32.totalorder %v110, inf
  %vm151 = vcmp.eq.s32.totalorder %v111, inf
  %vm152 = vmand %vm150, %vm151
  %v153 = vsel %vm152, %v149, %v147
  %v154 = vand.u32 2147483647, %v153
  %v155 = vand.u32 %v107, 2147483648
  %v156 = vor.u32 %v154, %v155
  %s157 = scalar_lea.vmem %s2, 8
  %158 = vst [vmem:[%s157] sm:$0xff] %v156
  %s159 = scalar_lea.vmem %s0, 24
  %v160 = vld [vmem:[%s159] sm:$0xff]
  %s161 = scalar_lea.vmem %s1, 24
  %v162 = vld [vmem:[%s161] sm:$0xff]
  %v163 = vand.u32 2147483647, %v162
  %v164 = vand.u32 2147483647, %v160
  %v165 = vmin.f32 %v163, %v164
  %v166 = vmax.f32 %v163, %v164
  %v167 = vrcp.pop %v166
  %v168 = vmul.f32 %v165, %v167
  %v169 = vmul.f32 %v168, %v168
  %v170 = vmul.f32 0.002785687, %v169
  %v171 = vadd.f32 %v170, -0.015866
  %v172 = vmul.f32 %v171, %v169
  %v173 = vadd.f32 %v172, 0.04247222
  %v174 = vmul.f32 %v173, %v169
  %v175 = vadd.f32 %v174, -0.074975304
  %v176 = vmul.f32 %v175, %v169
  %v177 = vadd.f32 %v176, 0.1064488
  %v178 = vmul.f32 %v177, %v169
  %v179 = vadd.f32 %v178, -0.14207031
  %v180 = vmul.f32 %v179, %v169
  %v181 = vadd.f32 %v180, 0.19993454
  %v182 = vmul.f32 %v181, %v169
  %v183 = vadd.f32 %v182, -0.33333147
  %v184 = vmul.f32 %v183, %v169
  %v185 = vmul.f32 %v184, %v168
  %v186 = vadd.f32 %v185, %v168
  %vm187 = vcmp.gt.f32.partialorder %v164, %v163
  %v188 = vsub.f32 1.5707964, %v186
  %v189 = vsel %vm187, %v188, %v186
  %vm190 = vcmp.lt.f32.partialorder %v162, 0.0
  %v191 = vsub.f32 3.1415927, %v189
  %v192 = vsel %vm190, %v191, %v189
  %vm193 = vcmp.lt.s32.totalorder %v162, 0
  %v194 = vsel %vm193, 3.1415927, 0.0
  %vm195 = vcmp.eq.f32.partialorder %v160, 0.0
  %v196 = vsel %vm195, %v194, %v192
  %vm197 = vcmp.ne.f32.partialorder %v162, %v162
  %vm198 = vcmp.ne.f32.partialorder %v160, %v160
  %vm199 = vmor %vm197, %vm198
  %v200 = vsel %vm199, nan, %v196
  %vm201 = vcmp.lt.f32.partialorder %v162, 0.0
  %v202 = vsel %vm201, 2.3561945, 0.7853982
  %vm203 = vcmp.eq.s32.totalorder %v163, inf
  %vm204 = vcmp.eq.s32.totalorder %v164, inf
  %vm205 = vmand %vm203, %vm204
  %v206 = vsel %vm205, %v202, %v200
  %v207 = vand.u32 2147483647, %v206
  %v208 = vand.u32 %v160, 2147483648
  %v209 = vor.u32 %v207, %v208
  %s210 = scalar_lea.vmem %s2, 24
  %211 = vst [vmem:[%s210] sm:$0xff] %v209

// kernel: adapter_conv_forward.3
$region0: #{adapter_conv_forward.3}
  #allocation0 [shape = 'u32[]', space=smem, size = 0x4, offset = 0x4, fixed_abs, tag = 'smem constant byte address 0x4 - core index']
  #allocation1 [shape = 'u32[144,128]{1,0:T(1,128)}', space=vmem, size = 0x12000, scoped, tag = 'internal scratch']
  %s0 = inlined_call_operand.vmem [shape: f32[1,2], index: 0, kind: input, shape index: {}]
  %s1 = inlined_call_operand.vmem [shape: f32[16,256], index: 1, kind: input, shape index: {}]
  %s2 = inlined_call_operand.vmem [shape: f32[16,256], index: 2, kind: input, shape index: {}]
  %s3 = inlined_call_operand.vmem [shape: f32[256,256], index: 3, kind: input, shape index: {}]
  %s4 = inlined_call_operand.vmem [shape: f32[256,256], index: 4, kind: input, shape index: {}]
  %s5 = inlined_call_operand.vmem [shape: f32[256,256], index: 5, kind: input, shape index: {}]
  %s6 = inlined_call_operand.vmem [shape: f32[256,256], index: 6, kind: input, shape index: {}]
  %s7 = inlined_call_operand.vmem [shape: f32[16,256], index: 7, kind: output, shape index: {0}]
  %s8 = inlined_call_operand.vmem [shape: f32[16,256], index: 8, kind: output, shape index: {1}]
  %s9 = inlined_call_operand.vmem [shape: f32[16,256], index: 9, kind: output, shape index: {2}]
  %10 = xla_tuple %s7, %s8, %s9
  %s11 = sld [smem:[#allocation0]]
  $region77: #{adapter_conv_forward.3} parent=0
    _
  %s13 = ssub.s32 1, %s11
  %s14 = scalar_select 0, %s13, %s11
  loop: start=0, step=1, limit=4
  $region2: #{adapter_conv_forward.3} parent=0 // loop_pre_header
    _
  $region3: #{adapter_conv_forward.3} parent=0 // loop_header
    %s16 = sphi 0, %s20
    %p17 = scmp.ge.s32.totalorder %s16, 4
    %s24 = sphi 0, %s24
    %s26 = sphi 0, %s24
    %s27 = sphi 0, %s26
    %s41 = sphi 0, %s27
    %s47 = sphi 0, %s49
    %s50 = sphi 0, %s47
    %s51 = sphi 0, %s50
    %s67 = sphi 0, %s51
    %s73 = sphi 0, %s75
    %s76 = sphi 0, %s73
    %s77 = sphi 0, %s76
    %s93 = sphi 0, %s77
    %s97 = sphi 0, %s97
    %s99 = sphi 0, %s97
    %s100 = sphi 0, %s99
    %s114 = sphi 0, %s100
    %s118 = sphi 0, %s118
    %s120 = sphi 0, %s118
    %s121 = sphi 0, %s120
    %s135 = sphi 0, %s121
    %s139 = sphi 0, %s139
    %s141 = sphi 0, %s139
    %s142 = sphi 0, %s141
    %s156 = sphi 0, %s142
    %s160 = sphi 0, %s160
    %s162 = sphi 0, %s160
    %s163 = sphi 0, %s162
    %s177 = sphi 0, %s163
    %s183 = sphi 0, %s185
    %s186 = sphi 0, %s183
    %s187 = sphi 0, %s186
    %s203 = sphi 0, %s187
    %s209 = sphi 0, %s211
    %s212 = sphi 0, %s209
    %s213 = sphi 0, %s212
    %s229 = sphi 0, %s213
    %s235 = sphi 0, %s237
    %s238 = sphi 0, %s235
    %s239 = sphi 0, %s238
    %s255 = sphi 0, %s239
  $region4: #{adapter_conv_forward.3} parent=0 // loop_header_branch
    %19 = sbr.rel (%p17) target = $region8
  $region5: #{adapter_conv_forward.3} parent=0 // loop_body
    %s21 = ssub.s32 %s16, 1
    %s22 = ssub.s32 %s16, 2
    %s23 = sadd.s32 %s16, 1
    %s25 = sadd.s32 %s24, 1
    %p28 = scmp.eq.s32.totalorder %s16, 1
    %p29 = scmp.ne.s32.totalorder %s24, %s26
    %p30 = scmp.eq.s32.totalorder %s16, 0
    %p31 = por %p29, %p30
    %p32 = scmp.ne.s32.totalorder %s24, %s26
    %p33 = scmp.eq.s32.totalorder %s21, 1
    %p34 = por %p32, %p33
    %p35 = scmp.ne.s32.totalorder %s26, %s27
    %p36 = scmp.eq.s32.totalorder %s21, 0
    %p37 = por %p35, %p36
    %p38 = scmp.ne.s32.totalorder %s26, %s27
    %p39 = scmp.eq.s32.totalorder %s22, 1
    %p40 = por %p38, %p39
    %p42 = scmp.ne.s32.totalorder %s27, %s41
    %p43 = scmp.eq.s32.totalorder %s22, 0
    %p44 = por %p42, %p43
    %s45 = ssub.s32 %s16, %s23
    %p46 = scmp.eq.s32.totalorder %s45, 0
    %s48 = sadd.s32 %s47, 1
    %s49 = scalar_select %p46, %s47, %s48
    %p52 = pneg %p46
    %p53 = scmp.eq.s32.totalorder %s16, 1
    %p54 = por %p52, %p53
    %p55 = scmp.ne.s32.totalorder %s47, %s50
    %p56 = scmp.eq.s32.totalorder %s16, 0
    %p57 = por %p55, %p56
    %p58 = scmp.ne.s32.totalorder %s47, %s50
    %p59 = scmp.eq.s32.totalorder %s21, 1
    %p60 = por %p58, %p59
    %p61 = scmp.ne.s32.totalorder %s50, %s51
    %p62 = scmp.eq.s32.totalorder %s21, 0
    %p63 = por %p61, %p62
    %p64 = scmp.ne.s32.totalorder %s50, %s51
    %p65 = scmp.eq.s32.totalorder %s22, 1
    %p66 = por %p64, %p65
    %p68 = scmp.ne.s32.totalorder %s51, %s67
    %p69 = scmp.eq.s32.totalorder %s22, 0
    %p70 = por %p68, %p69
    %s71 = ssub.s32 %s16, %s23
    %p72 = scmp.eq.s32.totalorder %s71, 0
    %s74 = sadd.s32 %s73, 1
    %s75 = scalar_select %p72, %s73, %s74
    %p78 = pneg %p72
    %p79 = scmp.eq.s32.totalorder %s16, 1
    %p80 = por %p78, %p79
    %p81 = scmp.ne.s32.totalorder %s73, %s76
    %p82 = scmp.eq.s32.totalorder %s16, 0
    %p83 = por %p81, %p82
    %p84 = scmp.ne.s32.totalorder %s73, %s76
    %p85 = scmp.eq.s32.totalorder %s21, 1
    %p86 = por %p84, %p85
    %p87 = scmp.ne.s32.totalorder %s76, %s77
    %p88 = scmp.eq.s32.totalorder %s21, 0
    %p89 = por %p87, %p88
    %p90 = scmp.ne.s32.totalorder %s76, %s77
    %p91 = scmp.eq.s32.totalorder %s22, 1
    %p92 = por %p90, %p91
    %p94 = scmp.ne.s32.totalorder %s77, %s93
    %p95 = scmp.eq.s32.totalorder %s22, 0
    %p96 = por %p94, %p95
    %s98 = sadd.s32 %s97, 1
    %p101 = scmp.eq.s32.totalorder %s16, 1
    %p102 = scmp.ne.s32.totalorder %s97, %s99
    %p103 = scmp.eq.s32.totalorder %s16, 0
    %p104 = por %p102, %p103
    %p105 = scmp.ne.s32.totalorder %s97, %s99
    %p106 = scmp.eq.s32.totalorder %s21, 1
    %p107 = por %p105, %p106
    %p108 = scmp.ne.s32.totalorder %s99, %s100
    %p109 = scmp.eq.s32.totalorder %s21, 0
    %p110 = por %p108, %p109
    %p111 = scmp.ne.s32.totalorder %s99, %s100
    %p112 = scmp.eq.s32.totalorder %s22, 1
    %p113 = por %p111, %p112
    %p115 = scmp.ne.s32.totalorder %s100, %s114
    %p116 = scmp.eq.s32.totalorder %s22, 0
    %p117 = por %p115, %p116
    %s119 = sadd.s32 %s118, 1
    %p122 = scmp.eq.s32.totalorder %s16, 1
    %p123 = scmp.ne.s32.totalorder %s118, %s120
    %p124 = scmp.eq.s32.totalorder %s16, 0
    %p125 = por %p123, %p124
    %p126 = scmp.ne.s32.totalorder %s118, %s120
    %p127 = scmp.eq.s32.totalorder %s21, 1
    %p128 = por %p126, %p127
    %p129 = scmp.ne.s32.totalorder %s120, %s121
    %p130 = scmp.eq.s32.totalorder %s21, 0
    %p131 = por %p129, %p130
    %p132 = scmp.ne.s32.totalorder %s120, %s121
    %p133 = scmp.eq.s32.totalorder %s22, 1
    %p134 = por %p132, %p133
    %p136 = scmp.ne.s32.totalorder %s121, %s135
    %p137 = scmp.eq.s32.totalorder %s22, 0
    %p138 = por %p136, %p137
    %s140 = sadd.s32 %s139, 1
    %p143 = scmp.eq.s32.totalorder %s16, 1
    %p144 = scmp.ne.s32.totalorder %s139, %s141
    %p145 = scmp.eq.s32.totalorder %s16, 0
    %p146 = por %p144, %p145
    %p147 = scmp.ne.s32.totalorder %s139, %s141
    %p148 = scmp.eq.s32.totalorder %s21, 1
    %p149 = por %p147, %p148
    %p150 = scmp.ne.s32.totalorder %s141, %s142
    %p151 = scmp.eq.s32.totalorder %s21, 0
    %p152 = por %p150, %p151
    %p153 = scmp.ne.s32.totalorder %s141, %s142
    %p154 = scmp.eq.s32.totalorder %s22, 1
    %p155 = por %p153, %p154
    %p157 = scmp.ne.s32.totalorder %s142, %s156
    %p158 = scmp.eq.s32.totalorder %s22, 0
    %p159 = por %p157, %p158
    %s161 = sadd.s32 %s160, 1
    %p164 = scmp.eq.s32.totalorder %s16, 1
    %p165 = scmp.ne.s32.totalorder %s160, %s162
    %p166 = scmp.eq.s32.totalorder %s16, 0
    %p167 = por %p165, %p166
    %p168 = scmp.ne.s32.totalorder %s160, %s162
    %p169 = scmp.eq.s32.totalorder %s21, 1
    %p170 = por %p168, %p169
    %p171 = scmp.ne.s32.totalorder %s162, %s163
    %p172 = scmp.eq.s32.totalorder %s21, 0
    %p173 = por %p171, %p172
    %p174 = scmp.ne.s32.totalorder %s162, %s163
    %p175 = scmp.eq.s32.totalorder %s22, 1
    %p176 = por %p174, %p175
    %p178 = scmp.ne.s32.totalorder %s163, %s177
    %p179 = scmp.eq.s32.totalorder %s22, 0
    %p180 = por %p178, %p179
    %s181 = ssub.s32 %s16, %s23
    %p182 = scmp.eq.s32.totalorder %s181, 0
    %s184 = sadd.s32 %s183, 1
    %s185 = scalar_select %p182, %s183, %s184
    %p188 = pneg %p182
    %p189 = scmp.eq.s32.totalorder %s16, 1
    %p190 = por %p188, %p189
    %p191 = scmp.ne.s32.totalorder %s183, %s186
    %p192 = scmp.eq.s32.totalorder %s16, 0
    %p193 = por %p191, %p192
    %p194 = scmp.ne.s32.totalorder %s183, %s186
    %p195 = scmp.eq.s32.totalorder %s21, 1
    %p196 = por %p194, %p195
    %p197 = scmp.ne.s32.totalorder %s186, %s187
    %p198 = scmp.eq.s32.totalorder %s21, 0
    %p199 = por %p197, %p198
    %p200 = scmp.ne.s32.totalorder %s186, %s187
    %p201 = scmp.eq.s32.totalorder %s22, 1
    %p202 = por %p200, %p201
    %p204 = scmp.ne.s32.totalorder %s187, %s203
    %p205 = scmp.eq.s32.totalorder %s22, 0
    %p206 = por %p204, %p205
    %s207 = ssub.s32 %s16, %s23
    %p208 = scmp.eq.s32.totalorder %s207, 0
    %s210 = sadd.s32 %s209, 1
    %s211 = scalar_select %p208, %s209, %s210
    %p214 = pneg %p208
    %p215 = scmp.eq.s32.totalorder %s16, 1
    %p216 = por %p214, %p215
    %p217 = scmp.ne.s32.totalorder %s209, %s212
    %p218 = scmp.eq.s32.totalorder %s16, 0
    %p219 = por %p217, %p218
    %p220 = scmp.ne.s32.totalorder %s209, %s212
    %p221 = scmp.eq.s32.totalorder %s21, 1
    %p222 = por %p220, %p221
    %p223 = scmp.ne.s32.totalorder %s212, %s213
    %p224 = scmp.eq.s32.totalorder %s21, 0
    %p225 = por %p223, %p224
    %p226 = scmp.ne.s32.totalorder %s212, %s213
    %p227 = scmp.eq.s32.totalorder %s22, 1
    %p228 = por %p226, %p227
    %p230 = scmp.ne.s32.totalorder %s213, %s229
    %p231 = scmp.eq.s32.totalorder %s22, 0
    %p232 = por %p230, %p231
    %s233 = ssub.s32 %s16, %s23
    %p234 = scmp.eq.s32.totalorder %s233, 0
    %s236 = sadd.s32 %s235, 1
    %s237 = scalar_select %p234, %s235, %s236
    %p240 = pneg %p234
    %p241 = scmp.eq.s32.totalorder %s16, 1
    %p242 = por %p240, %p241
    %p243 = scmp.ne.s32.totalorder %s235, %s238
    %p244 = scmp.eq.s32.totalorder %s16, 0
    %p245 = por %p243, %p244
    %p246 = scmp.ne.s32.totalorder %s235, %s238
    %p247 = scmp.eq.s32.totalorder %s21, 1
    %p248 = por %p246, %p247
    %p249 = scmp.ne.s32.totalorder %s238, %s239
    %p250 = scmp.eq.s32.totalorder %s21, 0
    %p251 = por %p249, %p250
    %p252 = scmp.ne.s32.totalorder %s238, %s239
    %p253 = scmp.eq.s32.totalorder %s22, 1
    %p254 = por %p252, %p253
    %p256 = scmp.ne.s32.totalorder %s239, %s255
    %p257 = scmp.eq.s32.totalorder %s22, 0
    %p258 = por %p256, %p257
    %p259 = scmp.le.s32.totalorder 1, %s16
    %p260 = scmp.lt.s32.totalorder %s16, 3
    %p261 = pnand %p259, %p260
    %p262 = pneg %p261
    // Predicated region
    $region9: #{adapter_conv_forward.3} parent=5 // pred_check
      _
    $region10: #{adapter_conv_forward.3} parent=5 // pred_check_branch
      %264 = sbr.rel (%p261) target = $region12
    $region11: #{adapter_conv_forward.3} parent=5 // pred_region
      %s265 = ssub.s32 %s16, 1
      // Predicated region
      $region13: #{adapter_conv_forward.3} parent=11 // pred_check
        %p266 = pneg %p37
      $region14: #{adapter_conv_forward.3} parent=11 // pred_check_branch
        %268 = sbr.rel (%p266) target = $region16
      $region15: #{adapter_conv_forward.3} parent=11 // pred_region
        _
      $region16: #{adapter_conv_forward.3} parent=11 // pred_fallthru
        _
      // Predicated region
      $region17: #{adapter_conv_forward.3} parent=11 // pred_check
        %p269 = pneg %p110
      $region18: #{adapter_conv_forward.3} parent=11 // pred_check_branch
        %271 = sbr.rel (%p269) target = $region20
      $region19: #{adapter_conv_forward.3} parent=11 // pred_region
        _
      $region20: #{adapter_conv_forward.3} parent=11 // pred_fallthru
        _
      // Predicated region
      $region21: #{adapter_conv_forward.3} parent=11 // pred_check
        %p272 = pneg %p131
      $region22: #{adapter_conv_forward.3} parent=11 // pred_check_branch
        %274 = sbr.rel (%p272) target = $region24
      $region23: #{adapter_conv_forward.3} parent=11 // pred_region
        _
      $region24: #{adapter_conv_forward.3} parent=11 // pred_fallthru
        _
      // Predicated region
      $region25: #{adapter_conv_forward.3} parent=11 // pred_check
        %p275 = pneg %p152
      $region26: #{adapter_conv_forward.3} parent=11 // pred_check_branch
        %277 = sbr.rel (%p275) target = $region28
      $region27: #{adapter_conv_forward.3} parent=11 // pred_region
        _
      $region28: #{adapter_conv_forward.3} parent=11 // pred_fallthru
        _
      // Predicated region
      $region29: #{adapter_conv_forward.3} parent=11 // pred_check
        %p278 = pneg %p173
      $region30: #{adapter_conv_forward.3} parent=11 // pred_check_branch
        %280 = sbr.rel (%p278) target = $region32
      $region31: #{adapter_conv_forward.3} parent=11 // pred_region
        _
      $region32: #{adapter_conv_forward.3} parent=11 // pred_fallthru
        _
    $region12: #{adapter_conv_forward.3} parent=5 // pred_fallthru
      _
    %p281 = scmp.lt.s32.totalorder %s16, 2
    // Predicated region
    $region33: #{adapter_conv_forward.3} parent=5 // pred_check
      %p282 = pneg %p281
    $region34: #{adapter_conv_forward.3} parent=5 // pred_check_branch
      %284 = sbr.rel (%p282) target = $region36
    $region35: #{adapter_conv_forward.3} parent=5 // pred_region
      // Predicated region
      $region37: #{adapter_conv_forward.3} parent=35 // pred_check
        %p285 = pneg %p57
      $region38: #{adapter_conv_forward.3} parent=35 // pred_check_branch
        %287 = sbr.rel (%p285) target = $region40
      $region39: #{adapter_conv_forward.3} parent=35 // pred_region
        %p288 = scmp.lt.s32.totalorder %s16, 1
        %s289 = scalar_select %p288, %s16, 1
        %s290 = smul.addr %s289, 2
        %s291 = smul.addr %s290, 8
        %s292 = scalar_lea.vmem %s1, %s291
      $region40: #{adapter_conv_forward.3} parent=35 // pred_fallthru
        _
      // Predicated region
      $region41: #{adapter_conv_forward.3} parent=35 // pred_check
        %p293 = pneg %p83
      $region42: #{adapter_conv_forward.3} parent=35 // pred_check_branch
        %295 = sbr.rel (%p293) target = $region44
      $region43: #{adapter_conv_forward.3} parent=35 // pred_region
        %p296 = scmp.lt.s32.totalorder %s16, 1
        %s297 = scalar_select %p296, %s16, 1
        %s298 = smul.addr %s297, 2
        %s299 = smul.addr %s298, 8
        %s300 = scalar_lea.vmem %s2, %s299
      $region44: #{adapter_conv_forward.3} parent=35 // pred_fallthru
        _
    $region36: #{adapter_conv_forward.3} parent=5 // pred_fallthru
      _
    %p301 = scmp.le.s32.totalorder 1, %s16
    %p302 = scmp.lt.s32.totalorder %s16, 3
    %p303 = pnand %p301, %p302
    %p304 = pneg %p303
    // Predicated region
    $region45: #{adapter_conv_forward.3} parent=5 // pred_check
      _
    $region46: #{adapter_conv_forward.3} parent=5 // pred_check_branch
      %306 = sbr.rel (%p303) target = $region48
    $region47: #{adapter_conv_forward.3} parent=5 // pred_region
      %s307 = ssub.s32 %s16, 1
      %p308 = pneg %p37
      %p309 = pneg %p34
      %p310 = scmp.lt.s32.totalorder %s21, 1
      %s311 = scalar_select %p310, %s21, 1
      %s312 = smul.addr %s311, 2
      %s313 = smul.addr %s312, 8
      %s314 = scalar_lea.vmem %s1, %s313
      %p315 = pneg %p63
      %p316 = pneg %p60
      %p317 = scmp.lt.s32.totalorder %s21, 1
      %s318 = scalar_select %p317, %s21, 1
      %s319 = smul.addr %s318, 2
      %s320 = smul.addr %s319, 8
      %s321 = scalar_lea.vmem %s2, %s320
      %p322 = pneg %p89
      %p323 = pneg %p86
      %p324 = pneg %p110
      %p325 = pneg %p107
      %p326 = pneg %p131
      %p327 = pneg %p128
      %p328 = pneg %p152
      %p329 = pneg %p149
      %p330 = pneg %p173
      %p331 = pneg %p170
      %p332 = pneg %p199
      %p333 = pneg %p196
      %p334 = scmp.lt.s32.totalorder %s21, 1
      %s335 = scalar_select %p334, %s21, 1
      %s336 = smul.addr %s335, 2
      %s337 = smul.addr %s336, 8
      %s338 = scalar_lea.vmem %s7, %s337
      %p339 = pneg %p225
      %p340 = pneg %p222
      %p341 = scmp.lt.s32.totalorder %s21, 1
      %s342 = scalar_select %p341, %s21, 1
      %s343 = smul.addr %s342, 2
      %s344 = smul.addr %s343, 8
      %s345 = scalar_lea.vmem %s8, %s344
      %p346 = pneg %p251
      %p347 = pneg %p248
      %p348 = scmp.lt.s32.totalorder %s21, 1
      %s349 = scalar_select %p348, %s21, 1
      %s350 = smul.addr %s349, 2
      %s351 = smul.addr %s350, 8
      %s352 = scalar_lea.vmem %s9, %s351
      %p353 = scmp.lt.s32.totalorder %s21, 1
      %s354 = scalar_select %p353, %s21, 1
      %s355 = smul.addr %s354, 2
      %s356 = smul.addr %s355, 8
      %s357 = scalar_lea.vmem %s1, %s356
      %p358 = scmp.lt.s32.totalorder %s21, 1
      %s359 = scalar_select %p358, %s21, 1
      %s360 = smul.addr %s359, 2
      %s361 = smul.addr %s360, 8
      %s362 = scalar_lea.vmem %s2, %s361
      %p363 = scmp.lt.s32.totalorder %s21, 1
      %s364 = scalar_select %p363, %s21, 1
      %s365 = smul.addr %s364, 2
      %s366 = smul.addr %s365, 8
      %s367 = scalar_lea.vmem %s7, %s366
      %p368 = scmp.lt.s32.totalorder %s21, 1
      %s369 = scalar_select %p368, %s21, 1
      %s370 = smul.addr %s369, 2
      %s371 = smul.addr %s370, 8
      %s372 = scalar_lea.vmem %s8, %s371
      %p373 = scmp.lt.s32.totalorder %s21, 1
      %s374 = scalar_select %p373, %s21, 1
      %s375 = smul.addr %s374, 2
      %s376 = smul.addr %s375, 8
      %s377 = scalar_lea.vmem %s9, %s376
      %v378 = vld [vmem:[%s3] sm:$0xff]
      %v379 = vld [vmem:[%s3 + $0x8] sm:$0xff]
      %v380 = vld [vmem:[%s3 + $0x10] sm:$0xff]
      %v381 = vld [vmem:[%s3 + $0x18] sm:$0xff]
      %v382 = vld [vmem:[%s3 + $0x20] sm:$0xff]
      %v383 = vld [vmem:[%s3 + $0x28] sm:$0xff]
      %v384 = vld [vmem:[%s3 + $0x30] sm:$0xff]
      %v385 = vld [vmem:[%s3 + $0x38] sm:$0xff]
      %v386 = vld [vmem:[%s3 + $0x40] sm:$0xff]
      %v387 = vld [vmem:[%s3 + $0x48] sm:$0xff]
      %v388 = vld [vmem:[%s3 + $0x50] sm:$0xff]
      %v389 = vld [vmem:[%s3 + $0x58] sm:$0xff]
      %v390 = vld [vmem:[%s3 + $0x60] sm:$0xff]
      %v391 = vld [vmem:[%s3 + $0x68] sm:$0xff]
      %v392 = vld [vmem:[%s3 + $0x70] sm:$0xff]
      %v393 = vld [vmem:[%s3 + $0x78] sm:$0xff]
      %v394 = vld [vmem:[%s3 + $0x80] sm:$0xff]
      %v395 = vld [vmem:[%s3 + $0x88] sm:$0xff]
      %v396 = vld [vmem:[%s3 + $0x90] sm:$0xff]
      %v397 = vld [vmem:[%s3 + $0x98] sm:$0xff]
      %v398 = vld [vmem:[%s3 + $0xa0] sm:$0xff]
      %v399 = vld [vmem:[%s3 + $0xa8] sm:$0xff]
      %v400 = vld [vmem:[%s3 + $0xb0] sm:$0xff]
      %v401 = vld [vmem:[%s3 + $0xb8] sm:$0xff]
      %v402 = vld [vmem:[%s3 + $0xc0] sm:$0xff]
      %v403 = vld [vmem:[%s3 + $0xc8] sm:$0xff]
      %v404 = vld [vmem:[%s3 + $0xd0] sm:$0xff]
      %v405 = vld [vmem:[%s3 + $0xd8] sm:$0xff]
      %v406 = vld [vmem:[%s3 + $0xe0] sm:$0xff]
      %v407 = vld [vmem:[%s3 + $0xe8] sm:$0xff]
      %v408 = vld [vmem:[%s3 + $0xf0] sm:$0xff]
      %v409 = vld [vmem:[%s3 + $0xf8] sm:$0xff]
      %v410 = vld [vmem:[%s3 + $0x100] sm:$0xff]
      %v411 = vld [vmem:[%s3 + $0x108] sm:$0xff]
      %v412 = vld [vmem:[%s3 + $0x110] sm:$0xff]
      %v413 = vld [vmem:[%s3 + $0x118] sm:$0xff]
      %v414 = vld [vmem:[%s3 + $0x120] sm:$0xff]
      %v415 = vld [vmem:[%s3 + $0x128] sm:$0xff]
      %v416 = vld [vmem:[%s3 + $0x130] sm:$0xff]
      %v417 = vld [vmem:[%s3 + $0x138] sm:$0xff]
      %v418 = vld [vmem:[%s3 + $0x140] sm:$0xff]
      %v419 = vld [vmem:[%s3 + $0x148] sm:$0xff]
      %v420 = vld [vmem:[%s3 + $0x150] sm:$0xff]
      %v421 = vld [vmem:[%s3 + $0x158] sm:$0xff]
      %v422 = vld [vmem:[%s3 + $0x160] sm:$0xff]
      %v423 = vld [vmem:[%s3 + $0x168] sm:$0xff]
      %v424 = vld [vmem:[%s3 + $0x170] sm:$0xff]
      %v425 = vld [vmem:[%s3 + $0x178] sm:$0xff]
      %v426 = vld [vmem:[%s3 + $0x180] sm:$0xff]
      %v427 = vld [vmem:[%s3 + $0x188] sm:$0xff]
      %v428 = vld [vmem:[%s3 + $0x190] sm:$0xff]
      %v429 = vld [vmem:[%s3 + $0x198] sm:$0xff]
      %v430 = vld [vmem:[%s3 + $0x1a0] sm:$0xff]
      %v431 = vld [vmem:[%s3 + $0x1a8] sm:$0xff]
      %v432 = vld [vmem:[%s3 + $0x1b0] sm:$0xff]
      %v433 = vld [vmem:[%s3 + $0x1b8] sm:$0xff]
      %v434 = vld [vmem:[%s3 + $0x1c0] sm:$0xff]
      %v435 = vld [vmem:[%s3 + $0x1c8] sm:$0xff]
      %v436 = vld [vmem:[%s3 + $0x1d0] sm:$0xff]
      %v437 = vld [vmem:[%s3 + $0x1d8] sm:$0xff]
      %v438 = vld [vmem:[%s3 + $0x1e0] sm:$0xff]
      %v439 = vld [vmem:[%s3 + $0x1e8] sm:$0xff]
      %v440 = vld [vmem:[%s3 + $0x1f0] sm:$0xff]
      %v441 = vld [vmem:[%s3 + $0x1f8] sm:$0xff]
      %v442 = vld [vmem:[%s4] sm:$0xff]
      %v443 = vld [vmem:[%s4 + $0x8] sm:$0xff]
      %v444 = vld [vmem:[%s4 + $0x10] sm:$0xff]
      %v445 = vld [vmem:[%s4 + $0x18] sm:$0xff]
      %v446 = vld [vmem:[%s4 + $0x20] sm:$0xff]
      %v447 = vld [vmem:[%s4 + $0x28] sm:$0xff]
      %v448 = vld [vmem:[%s4 + $0x30] sm:$0xff]
      %v449 = vld [vmem:[%s4 + $0x38] sm:$0xff]
      %v450 = vld [vmem:[%s4 + $0x40] sm:$0xff]
      %v451 = vld [vmem:[%s4 + $0x48] sm:$0xff]
      %v452 = vld [vmem:[%s4 + $0x50] sm:$0xff]
      %v453 = vld [vmem:[%s4 + $0x58] sm:$0xff]
      %v454 = vld [vmem:[%s4 + $0x60] sm:$0xff]
      %v455 = vld [vmem:[%s4 + $0x68] sm:$0xff]
      %v456 = vld [vmem:[%s4 + $0x70] sm:$0xff]
      %v457 = vld [vmem:[%s4 + $0x78] sm:$0xff]
      %v458 = vld [vmem:[%s4 + $0x80] sm:$0xff]
      %v459 = vld [vmem:[%s4 + $0x88] sm:$0xff]
      %v460 = vld [vmem:[%s4 + $0x90] sm:$0xff]
      %v461 = vld [vmem:[%s4 + $0x98] sm:$0xff]
      %v462 = vld [vmem:[%s4 + $0xa0] sm:$0xff]
      %v463 = vld [vmem:[%s4 + $0xa8] sm:$0xff]
      %v464 = vld [vmem:[%s4 + $0xb0] sm:$0xff]
      %v465 = vld [vmem:[%s4 + $0xb8] sm:$0xff]
      %v466 = vld [vmem:[%s4 + $0xc0] sm:$0xff]
      %v467 = vld [vmem:[%s4 + $0xc8] sm:$0xff]
      %v468 = vld [vmem:[%s4 + $0xd0] sm:$0xff]
      %v469 = vld [vmem:[%s4 + $0xd8] sm:$0xff]
      %v470 = vld [vmem:[%s4 + $0xe0] sm:$0xff]
      %v471 = vld [vmem:[%s4 + $0xe8] sm:$0xff]
      %v472 = vld [vmem:[%s4 + $0xf0] sm:$0xff]
      %v473 = vld [vmem:[%s4 + $0xf8] sm:$0xff]
      %v474 = vld [vmem:[%s4 + $0x100] sm:$0xff]
      %v475 = vld [vmem:[%s4 + $0x108] sm:$0xff]
      %v476 = vld [vmem:[%s4 + $0x110] sm:$0xff]
      %v477 = vld [vmem:[%s4 + $0x118] sm:$0xff]
      %v478 = vld [vmem:[%s4 + $0x120] sm:$0xff]
      %v479 = vld [vmem:[%s4 + $0x128] sm:$0xff]
      %v480 = vld [vmem:[%s4 + $0x130] sm:$0xff]
      %v481 = vld [vmem:[%s4 + $0x138] sm:$0xff]
      %v482 = vld [vmem:[%s4 + $0x140] sm:$0xff]
      %v483 = vld [vmem:[%s4 + $0x148] sm:$0xff]
      %v484 = vld [vmem:[%s4 + $0x150] sm:$0xff]
      %v485 = vld [vmem:[%s4 + $0x158] sm:$0xff]
      %v486 = vld [vmem:[%s4 + $0x160] sm:$0xff]
      %v487 = vld [vmem:[%s4 + $0x168] sm:$0xff]
      %v488 = vld [vmem:[%s4 + $0x170] sm:$0xff]
      %v489 = vld [vmem:[%s4 + $0x178] sm:$0xff]
      %v490 = vld [vmem:[%s4 + $0x180] sm:$0xff]
      %v491 = vld [vmem:[%s4 + $0x188] sm:$0xff]
      %v492 = vld [vmem:[%s4 + $0x190] sm:$0xff]
      %v493 = vld [vmem:[%s4 + $0x198] sm:$0xff]
      %v494 = vld [vmem:[%s4 + $0x1a0] sm:$0xff]
      %v495 = vld [vmem:[%s4 + $0x1a8] sm:$0xff]
      %v496 = vld [vmem:[%s4 + $0x1b0] sm:$0xff]
      %v497 = vld [vmem:[%s4 + $0x1b8] sm:$0xff]
      %v498 = vld [vmem:[%s4 + $0x1c0] sm:$0xff]
      %v499 = vld [vmem:[%s4 + $0x1c8] sm:$0xff]
      %v500 = vld [vmem:[%s4 + $0x1d0] sm:$0xff]
      %v501 = vld [vmem:[%s4 + $0x1d8] sm:$0xff]
      %v502 = vld [vmem:[%s4 + $0x1e0] sm:$0xff]
      %v503 = vld [vmem:[%s4 + $0x1e8] sm:$0xff]
      %v504 = vld [vmem:[%s4 + $0x1f0] sm:$0xff]
      %v505 = vld [vmem:[%s4 + $0x1f8] sm:$0xff]
      %v506 = vld [vmem:[%s362] sm:$0xff]
      %v507 = vld [vmem:[%s362 + $0x8] sm:$0xff]
      %508 = vmatprep.subr.mxu0 %v379
      %509 = vmatpush1.msra.mxu0 %v378
      %510 = vmatprep.subr.mxu0 %v381
      %511 = vmatpush1.msra.mxu0 %v380
      %512 = vmatprep.subr.mxu0 %v383
      %513 = vmatpush1.msra.mxu0 %v382
      %514 = vmatprep.subr.mxu0 %v385
      %515 = vmatpush1.msra.mxu0 %v384
      %516 = vmatprep.subr.mxu0 %v387
      %517 = vmatpush1.msra.mxu0 %v386
      %518 = vmatprep.subr.mxu0 %v389
      %519 = vmatpush1.msra.mxu0 %v388
      %520 = vmatprep.subr.mxu0 %v391
      %521 = vmatpush1.msra.mxu0 %v390
      %522 = vmatprep.subr.mxu0 %v393
      %523 = vmatpush1.msra.mxu0 %v392
      %524 = vmatprep.subr.mxu0 %v395
      %525 = vmatpush1.msra.mxu0 %v394
      %526 = vmatprep.subr.mxu0 %v397
      %527 = vmatpush1.msra.mxu0 %v396
      %528 = vmatprep.subr.mxu0 %v399
      %529 = vmatpush1.msra.mxu0 %v398
      %530 = vmatprep.subr.mxu0 %v401
      %531 = vmatpush1.msra.mxu0 %v400
      %532 = vmatprep.subr.mxu0 %v403
      %533 = vmatpush1.msra.mxu0 %v402
      %534 = vmatprep.subr.mxu0 %v405
      %535 = vmatpush1.msra.mxu0 %v404
      %536 = vmatprep.subr.mxu0 %v407
      %537 = vmatpush1.msra.mxu0 %v406
      %538 = vmatprep.subr.mxu0 %v409
      %539 = vmatpush1.msra.mxu0 %v408
      %540 = vmatprep.subr.mxu0 %v411
      %541 = vmatpush1.msra.mxu0 %v410
      %542 = vmatprep.subr.mxu0 %v413
      %543 = vmatpush1.msra.mxu0 %v412
      %544 = vmatprep.subr.mxu0 %v415
      %545 = vmatpush1.msra.mxu0 %v414
      %546 = vmatprep.subr.mxu0 %v417
      %547 = vmatpush1.msra.mxu0 %v416
      %548 = vmatprep.subr.mxu0 %v419
      %549 = vmatpush1.msra.mxu0 %v418
      %550 = vmatprep.subr.mxu0 %v421
      %551 = vmatpush1.msra.mxu0 %v420
      %552 = vmatprep.subr.mxu0 %v423
      %553 = vmatpush1.msra.mxu0 %v422
      %554 = vmatprep.subr.mxu0 %v425
      %555 = vmatpush1.msra.mxu0 %v424
      %556 = vmatprep.subr.mxu0 %v427
      %557 = vmatpush1.msra.mxu0 %v426
      %558 = vmatprep.subr.mxu0 %v429
      %559 = vmatpush1.msra.mxu0 %v428
      %560 = vmatprep.subr.mxu0 %v431
      %561 = vmatpush1.msra.mxu0 %v430
      %562 = vmatprep.subr.mxu0 %v433
      %563 = vmatpush1.msra.mxu0 %v432
      %564 = vmatprep.subr.mxu0 %v435
      %565 = vmatpush1.msra.mxu0 %v434
      %566 = vmatprep.subr.mxu0 %v437
      %567 = vmatpush1.msra.mxu0 %v436
      %568 = vmatprep.subr.mxu0 %v439
      %569 = vmatpush1.msra.mxu0 %v438
      %570 = vmatprep.subr.mxu0 %v441
      %571 = vmatpush1.msra.mxu0 %v440
      %572 = vmatprep.mubr.f32.mxu0 %v507
      %573 = vmatmul.mubr.f32.gmra.mrb[0].mxu0 %v506
      %v574 = vpop.f32.mrb[0].mxu0
      %v575 = vadd.f32 0.0, %v574
      %v576 = vpop.f32.mrb[0].mxu0
      %v577 = vadd.f32 0.0, %v576
      %578 = vdwg.mxu0
      %579 = vmatprep.subr.mxu0 %v443
      %580 = vmatpush1.msra.mxu0 %v442
      %581 = vmatprep.subr.mxu0 %v445
      %582 = vmatpush1.msra.mxu0 %v444
      %583 = vmatprep.subr.mxu0 %v447
      %584 = vmatpush1.msra.mxu0 %v446
      %585 = vmatprep.subr.mxu0 %v449
      %586 = vmatpush1.msra.mxu0 %v448
      %587 = vmatprep.subr.mxu0 %v451
      %588 = vmatpush1.msra.mxu0 %v450
      %589 = vmatprep.subr.mxu0 %v453
      %590 = vmatpush1.msra.mxu0 %v452
      %591 = vmatprep.subr.mxu0 %v455
      %592 = vmatpush1.msra.mxu0 %v454
      %593 = vmatprep.subr.mxu0 %v457
      %594 = vmatpush1.msra.mxu0 %v456
      %595 = vmatprep.subr.mxu0 %v459
      %596 = vmatpush1.msra.mxu0 %v458
      %597 = vmatprep.subr.mxu0 %v461
      %598 = vmatpush1.msra.mxu0 %v460
      %599 = vmatprep.subr.mxu0 %v463
      %600 = vmatpush1.msra.mxu0 %v462
      %601 = vmatprep.subr.mxu0 %v465
      %602 = vmatpush1.msra.mxu0 %v464
      %603 = vmatprep.subr.mxu0 %v467
      %604 = vmatpush1.msra.mxu0 %v466
      %605 = vmatprep.subr.mxu0 %v469
      %606 = vmatpush1.msra.mxu0 %v468
      %607 = vmatprep.subr.mxu0 %v471
      %608 = vmatpush1.msra.mxu0 %v470
      %609 = vmatprep.subr.mxu0 %v473
      %610 = vmatpush1.msra.mxu0 %v472
      %611 = vmatprep.subr.mxu0 %v475
      %612 = vmatpush1.msra.mxu0 %v474
      %613 = vmatprep.subr.mxu0 %v477
      %614 = vmatpush1.msra.mxu0 %v476
      %615 = vmatprep.subr.mxu0 %v479
      %616 = vmatpush1.msra.mxu0 %v478
      %617 = vmatprep.subr.mxu0 %v481
      %618 = vmatpush1.msra.mxu0 %v480
      %619 = vmatprep.subr.mxu0 %v483
      %620 = vmatpush1.msra.mxu0 %v482
      %621 = vmatprep.subr.mxu0 %v485
      %622 = vmatpush1.msra.mxu0 %v484
      %623 = vmatprep.subr.mxu0 %v487
      %624 = vmatpush1.msra.mxu0 %v486
      %625 = vmatprep.subr.mxu0 %v489
      %626 = vmatpush1.msra.mxu0 %v488
      %627 = vmatprep.subr.mxu0 %v491
      %628 = vmatpush1.msra.mxu0 %v490
      %629 = vmatprep.subr.mxu0 %v493
      %630 = vmatpush1.msra.mxu0 %v492
      %631 = vmatprep.subr.mxu0 %v495
      %632 = vmatpush1.msra.mxu0 %v494
      %633 = vmatprep.subr.mxu0 %v497
      %634 = vmatpush1.msra.mxu0 %v496
      %635 = vmatprep.subr.mxu0 %v499
      %636 = vmatpush1.msra.mxu0 %v498
      %637 = vmatprep.subr.mxu0 %v501
      %638 = vmatpush1.msra.mxu0 %v500
      %639 = vmatprep.subr.mxu0 %v503
      %640 = vmatpush1.msra.mxu0 %v502
      %641 = vmatprep.subr.mxu0 %v505
      %642 = vmatpush1.msra.mxu0 %v504
      %643 = vmatprep.mubr.f32.mxu0 %v507
      %644 = vmatmul.mubr.f32.gmra.mrb[0].mxu0 %v506
      %v645 = vpop.f32.mrb[0].mxu0
      %v646 = vadd.f32 0.0, %v645
      %v647 = vpop.f32.mrb[0].mxu0
      %v648 = vadd.f32 0.0, %v647
      %649 = vdwg.mxu0
      %v650 = vmul.f32 %v575, %v575
      %v651 = vmul.f32 %v577, %v577
      %v652 = vmul.f32 %v646, %v646
      %v653 = vmul.f32 %v648, %v648
      %v654 = vadd.f32 %v650, %v652
      %v655 = vadd.f32 %v651, %v653
      %vm656 = vcmp.lt.f32.partialorder %v654, 1e-05
      %vm657 = vcmp.lt.f32.partialorder %v655, 1e-05
      %vm658 = vcmp.gt.f32.partialorder %v654, -1e-05
      %vm659 = vcmp.gt.f32.partialorder %v655, -1e-05
      %vm660 = vmand %vm656, %vm658
      %vm661 = vmand %vm657, %vm659
      %v662 = vsel %vm660, 1e-05, %v654
      %v663 = vsel %vm661, 1e-05, %v655
      %v664 = vrsqrt.pop %v662
      %v665 = vmul.f32 %v662, %v664
      %vm666 = vcmp.eq.f32.partialorder %v662, inf
      %v667 = vsel %vm666, %v662, %v665
      %vm668 = vcmp.eq.f32.partialorder %v662, 0.0
      %v669 = vand.u32 %v662, 2147483648
      %v670 = vsel %vm668, %v669, %v667
      %v671 = vrsqrt.pop %v663
      %v672 = vmul.f32 %v663, %v671
      %vm673 = vcmp.eq.f32.partialorder %v663, inf
      %v674 = vsel %vm673, %v663, %v672
      %vm675 = vcmp.eq.f32.partialorder %v663, 0.0
      %v676 = vand.u32 %v663, 2147483648
      %v677 = vsel %vm675, %v676, %v674
      %v678 = vld [vmem:[%s357] sm:$0xff]
      %v679 = vld [vmem:[%s357 + $0x8] sm:$0xff]
      %680 = vmatprep.subr.mxu0 %v379
      %681 = vmatpush1.msra.mxu0 %v378
      %682 = vmatprep.subr.mxu0 %v381
      %683 = vmatpush1.msra.mxu0 %v380
      %684 = vmatprep.subr.mxu0 %v383
      %685 = vmatpush1.msra.mxu0 %v382
      %686 = vmatprep.subr.mxu0 %v385
      %687 = vmatpush1.msra.mxu0 %v384
      %688 = vmatprep.subr.mxu0 %v387
      %689 = vmatpush1.msra.mxu0 %v386
      %690 = vmatprep.subr.mxu0 %v389
      %691 = vmatpush1.msra.mxu0 %v388
      %692 = vmatprep.subr.mxu0 %v391
      %693 = vmatpush1.msra.mxu0 %v390
      %694 = vmatprep.subr.mxu0 %v393
      %695 = vmatpush1.msra.mxu0 %v392
      %696 = vmatprep.subr.mxu0 %v395
      %697 = vmatpush1.msra.mxu0 %v394
      %698 = vmatprep.subr.mxu0 %v397
      %699 = vmatpush1.msra.mxu0 %v396
      %700 = vmatprep.subr.mxu0 %v399
      %701 = vmatpush1.msra.mxu0 %v398
      %702 = vmatprep.subr.mxu0 %v401
      %703 = vmatpush1.msra.mxu0 %v400
      %704 = vmatprep.subr.mxu0 %v403
      %705 = vmatpush1.msra.mxu0 %v402
      %706 = vmatprep.subr.mxu0 %v405
      %707 = vmatpush1.msra.mxu0 %v404
      %708 = vmatprep.subr.mxu0 %v407
      %709 = vmatpush1.msra.mxu0 %v406
      %710 = vmatprep.subr.mxu0 %v409
      %711 = vmatpush1.msra.mxu0 %v408
      %712 = vmatprep.subr.mxu0 %v411
      %713 = vmatpush1.msra.mxu0 %v410
      %714 = vmatprep.subr.mxu0 %v413
      %715 = vmatpush1.msra.mxu0 %v412
      %716 = vmatprep.subr.mxu0 %v415
      %717 = vmatpush1.msra.mxu0 %v414
      %718 = vmatprep.subr.mxu0 %v417
      %719 = vmatpush1.msra.mxu0 %v416
      %720 = vmatprep.subr.mxu0 %v419
      %721 = vmatpush1.msra.mxu0 %v418
      %722 = vmatprep.subr.mxu0 %v421
      %723 = vmatpush1.msra.mxu0 %v420
      %724 = vmatprep.subr.mxu0 %v423
      %725 = vmatpush1.msra.mxu0 %v422
      %726 = vmatprep.subr.mxu0 %v425
      %727 = vmatpush1.msra.mxu0 %v424
      %728 = vmatprep.subr.mxu0 %v427
      %729 = vmatpush1.msra.mxu0 %v426
      %730 = vmatprep.subr.mxu0 %v429
      %731 = vmatpush1.msra.mxu0 %v428
      %732 = vmatprep.subr.mxu0 %v431
      %733 = vmatpush1.msra.mxu0 %v430
      %734 = vmatprep.subr.mxu0 %v433
      %735 = vmatpush1.msra.mxu0 %v432
      %736 = vmatprep.subr.mxu0 %v435
      %737 = vmatpush1.msra.mxu0 %v434
      %738 = vmatprep.subr.mxu0 %v437
      %739 = vmatpush1.msra.mxu0 %v436
      %740 = vmatprep.subr.mxu0 %v439
      %741 = vmatpush1.msra.mxu0 %v438
      %742 = vmatprep.subr.mxu0 %v441
      %743 = vmatpush1.msra.mxu0 %v440
      %744 = vmatprep.mubr.f32.mxu0 %v679
      %745 = vmatmul.mubr.f32.gmra.mrb[0].mxu0 %v678
      %v746 = vpop.f32.mrb[0].mxu0
      %v747 = vadd.f32 0.0, %v746
      %v748 = vpop.f32.mrb[0].mxu0
      %v749 = vadd.f32 0.0, %v748
      %750 = vdwg.mxu0
      %751 = vmatprep.subr.mxu0 %v443
      %752 = vmatpush1.msra.mxu0 %v442
      %753 = vmatprep.subr.mxu0 %v445
      %754 = vmatpush1.msra.mxu0 %v444
      %755 = vmatprep.subr.mxu0 %v447
      %756 = vmatpush1.msra.mxu0 %v446
      %757 = vmatprep.subr.mxu0 %v449
      %758 = vmatpush1.msra.mxu0 %v448
      %759 = vmatprep.subr.mxu0 %v451
      %760 = vmatpush1.msra.mxu0 %v450
      %761 = vmatprep.subr.mxu0 %v453
      %762 = vmatpush1.msra.mxu0 %v452
      %763 = vmatprep.subr.mxu0 %v455
      %764 = vmatpush1.msra.mxu0 %v454
      %765 = vmatprep.subr.mxu0 %v457
      %766 = vmatpush1.msra.mxu0 %v456
      %767 = vmatprep.subr.mxu0 %v459
      %768 = vmatpush1.msra.mxu0 %v458
      %769 = vmatprep.subr.mxu0 %v461
      %770 = vmatpush1.msra.mxu0 %v460
      %771 = vmatprep.subr.mxu0 %v463
      %772 = vmatpush1.msra.mxu0 %v462
      %773 = vmatprep.subr.mxu0 %v465
      %774 = vmatpush1.msra.mxu0 %v464
      %775 = vmatprep.subr.mxu0 %v467
      %776 = vmatpush1.msra.mxu0 %v466
      %777 = vmatprep.subr.mxu0 %v469
      %778 = vmatpush1.msra.mxu0 %v468
      %779 = vmatprep.subr.mxu0 %v471
      %780 = vmatpush1.msra.mxu0 %v470
      %781 = vmatprep.subr.mxu0 %v473
      %782 = vmatpush1.msra.mxu0 %v472
      %783 = vmatprep.subr.mxu0 %v475
      %784 = vmatpush1.msra.mxu0 %v474
      %785 = vmatprep.subr.mxu0 %v477
      %786 = vmatpush1.msra.mxu0 %v476
      %787 = vmatprep.subr.mxu0 %v479
      %788 = vmatpush1.msra.mxu0 %v478
      %789 = vmatprep.subr.mxu0 %v481
      %790 = vmatpush1.msra.mxu0 %v480
      %791 = vmatprep.subr.mxu0 %v483
      %792 = vmatpush1.msra.mxu0 %v482
      %793 = vmatprep.subr.mxu0 %v485
      %794 = vmatpush1.msra.mxu0 %v484
      %795 = vmatprep.subr.mxu0 %v487
      %796 = vmatpush1.msra.mxu0 %v486
      %797 = vmatprep.subr.mxu0 %v489
      %798 = vmatpush1.msra.mxu0 %v488
      %799 = vmatprep.subr.mxu0 %v491
      %800 = vmatpush1.msra.mxu0 %v490
      %801 = vmatprep.subr.mxu0 %v493
      %802 = vmatpush1.msra.mxu0 %v492
      %803 = vmatprep.subr.mxu0 %v495
      %804 = vmatpush1.msra.mxu0 %v494
      %805 = vmatprep.subr.mxu0 %v497
      %806 = vmatpush1.msra.mxu0 %v496
      %807 = vmatprep.subr.mxu0 %v499
      %808 = vmatpush1.msra.mxu0 %v498
      %809 = vmatprep.subr.mxu0 %v501
      %810 = vmatpush1.msra.mxu0 %v500
      %811 = vmatprep.subr.mxu0 %v503
      %812 = vmatpush1.msra.mxu0 %v502
      %813 = vmatprep.subr.mxu0 %v505
      %814 = vmatpush1.msra.mxu0 %v504
      %815 = vmatprep.mubr.f32.mxu0 %v679
      %816 = vmatmul.mubr.f32.gmra.mrb[0].mxu0 %v678
      %v817 = vpop.f32.mrb[0].mxu0
      %v818 = vadd.f32 0.0, %v817
      %v819 = vpop.f32.mrb[0].mxu0
      %v820 = vadd.f32 0.0, %v819
      %821 = vdwg.mxu0
      %v822 = vmul.f32 %v747, %v747
      %v823 = vmul.f32 %v749, %v749
      %v824 = vmul.f32 %v818, %v818
      %v825 = vmul.f32 %v820, %v820
      %v826 = vadd.f32 %v822, %v824
      %v827 = vadd.f32 %v823, %v825
      %vm828 = vcmp.lt.f32.partialorder %v826, 1e-05
      %vm829 = vcmp.lt.f32.partialorder %v827, 1e-05
      %vm830 = vcmp.gt.f32.partialorder %v826, -1e-05
      %vm831 = vcmp.gt.f32.partialorder %v827, -1e-05
      %vm832 = vmand %vm828, %vm830
      %vm833 = vmand %vm829, %vm831
      %v834 = vsel %vm832, 1e-05, %v826
      %v835 = vsel %vm833, 1e-05, %v827
      %v836 = vrsqrt.pop %v834
      %v837 = vmul.f32 %v834, %v836
      %vm838 = vcmp.eq.f32.partialorder %v834, inf
      %v839 = vsel %vm838, %v834, %v837
      %vm840 = vcmp.eq.f32.partialorder %v834, 0.0
      %v841 = vand.u32 %v834, 2147483648
      %v842 = vsel %vm840, %v841, %v839
      %v843 = vrsqrt.pop %v835
      %v844 = vmul.f32 %v835, %v843
      %vm845 = vcmp.eq.f32.partialorder %v835, inf
      %v846 = vsel %vm845, %v835, %v844
      %vm847 = vcmp.eq.f32.partialorder %v835, 0.0
      %v848 = vand.u32 %v835, 2147483648
      %v849 = vsel %vm847, %v848, %v846
      %v850 = vld [vmem:[%s0] sm:$0x1]
      %v852 = vlaneseq
      %v853 = vshrl.u32 %v852, 7
      %v854 = vsub.s32 0, %v853
      %v855 = vrot.slane %v850, %v854
      %856 = vset.pattern.permute.xlu0 0
      %857 = vperm.xlu0 %856, %v855
      %v858 = vpop.permute.xlu0 %857
      %v860 = vmul.f32 %v670, %v858
      %v861 = vmul.f32 %v677, %v858
      %862 = vset.pattern.permute.xlu0 1
      %863 = vperm.xlu0 %862, %v855
      %v864 = vpop.permute.xlu0 %863
      %v866 = vmul.f32 %v842, %v864
      %v867 = vmul.f32 %v849, %v864
      %v868 = vadd.f32 %v860, %v866
      %v869 = vadd.f32 %v861, %v867
      %vm870 = vcmp.lt.f32.partialorder %v747, 1e-05
      %vm871 = vcmp.lt.f32.partialorder %v749, 1e-05
      %vm872 = vcmp.gt.f32.partialorder %v747, -1e-05
      %vm873 = vcmp.gt.f32.partialorder %v749, -1e-05
      %vm874 = vmand %vm870, %vm872
      %vm875 = vmand %vm871, %vm873
      %v876 = vsel %vm874, 1e-05, %v747
      %v877 = vsel %vm875, 1e-05, %v749
      %v878 = vmul.f32 %v876, %v876
      %v879 = vmul.f32 %v877, %v877
      %v880 = vadd.f32 %v878, %v824
      %v881 = vadd.f32 %v879, %v825
      %v882 = vrsqrt.pop %v880
      %v883 = vrsqrt.pop %v881
      %v884 = vmul.f32 %v876, %v882
      %v885 = vmul.f32 %v877, %v883
      %v886 = vmul.f32 %v884, %v868
      %v887 = vmul.f32 %v885, %v869
      %v888 = vmul.f32 %v886, 0.0625
      %v889 = vmul.f32 %v887, 0.0625
      %v890 = vmul.f32 %v818, %v882
      %v891 = vmul.f32 %v820, %v883
      %v892 = vmul.f32 %v890, %v868
      %v893 = vmul.f32 %v891, %v869
      %v894 = vmul.f32 %v892, 0.0625
      %v895 = vmul.f32 %v893, 0.0625
      %v896 = vld [vmem:[%s5] sm:$0xff]
      %v897 = vld [vmem:[%s5 + $0x8] sm:$0xff]
      %v898 = vld [vmem:[%s5 + $0x10] sm:$0xff]
      %v899 = vld [vmem:[%s5 + $0x18] sm:$0xff]
      %v900 = vld [vmem:[%s5 + $0x20] sm:$0xff]
      %v901 = vld [vmem:[%s5 + $0x28] sm:$0xff]
      %v902 = vld [vmem:[%s5 + $0x30] sm:$0xff]
      %v903 = vld [vmem:[%s5 + $0x38] sm:$0xff]
      %v904 = vld [vmem:[%s5 + $0x40] sm:$0xff]
      %v905 = vld [vmem:[%s5 + $0x48] sm:$0xff]
      %v906 = vld [vmem:[%s5 + $0x50] sm:$0xff]
      %v907 = vld [vmem:[%s5 + $0x58] sm:$0xff]
      %v908 = vld [vmem:[%s5 + $0x60] sm:$0xff]
      %v909 = vld [vmem:[%s5 + $0x68] sm:$0xff]
      %v910 = vld [vmem:[%s5 + $0x70] sm:$0xff]
      %v911 = vld [vmem:[%s5 + $0x78] sm:$0xff]
      %v912 = vld [vmem:[%s5 + $0x80] sm:$0xff]
      %v913 = vld [vmem:[%s5 + $0x88] sm:$0xff]
      %v914 = vld [vmem:[%s5 + $0x90] sm:$0xff]
      %v915 = vld [vmem:[%s5 + $0x98] sm:$0xff]
      %v916 = vld [vmem:[%s5 + $0xa0] sm:$0xff]
      %v917 = vld [vmem:[%s5 + $0xa8] sm:$0xff]
      %v918 = vld [vmem:[%s5 + $0xb0] sm:$0xff]
      %v919 = vld [vmem:[%s5 + $0xb8] sm:$0xff]
      %v920 = vld [vmem:[%s5 + $0xc0] sm:$0xff]
      %v921 = vld [vmem:[%s5 + $0xc8] sm:$0xff]
      %v922 = vld [vmem:[%s5 + $0xd0] sm:$0xff]
      %v923 = vld [vmem:[%s5 + $0xd8] sm:$0xff]
      %v924 = vld [vmem:[%s5 + $0xe0] sm:$0xff]
      %v925 = vld [vmem:[%s5 + $0xe8] sm:$0xff]
      %v926 = vld [vmem:[%s5 + $0xf0] sm:$0xff]
      %v927 = vld [vmem:[%s5 + $0xf8] sm:$0xff]
      %v928 = vld [vmem:[%s5 + $0x100] sm:$0xff]
      %v929 = vld [vmem:[%s5 + $0x108] sm:$0xff]
      %v930 = vld [vmem:[%s5 + $0x110] sm:$0xff]
      %v931 = vld [vmem:[%s5 + $0x118] sm:$0xff]
      %v932 = vld [vmem:[%s5 + $0x120] sm:$0xff]
      %v933 = vld [vmem:[%s5 + $0x128] sm:$0xff]
      %v934 = vld [vmem:[%s5 + $0x130] sm:$0xff]
      %v935 = vld [vmem:[%s5 + $0x138] sm:$0xff]
      %v936 = vld [vmem:[%s5 + $0x140] sm:$0xff]
      %v937 = vld [vmem:[%s5 + $0x148] sm:$0xff]
      %v938 = vld [vmem:[%s5 + $0x150] sm:$0xff]
      %v939 = vld [vmem:[%s5 + $0x158] sm:$0xff]
      %v940 = vld [vmem:[%s5 + $0x160] sm:$0xff]
      %v941 = vld [vmem:[%s5 + $0x168] sm:$0xff]
      %v942 = vld [vmem:[%s5 + $0x170] sm:$0xff]
      %v943 = vld [vmem:[%s5 + $0x178] sm:$0xff]
      %v944 = vld [vmem:[%s5 + $0x180] sm:$0xff]
      %v945 = vld [vmem:[%s5 + $0x188] sm:$0xff]
      %v946 = vld [vmem:[%s5 + $0x190] sm:$0xff]
      %v947 = vld [vmem:[%s5 + $0x198] sm:$0xff]
      %v948 = vld [vmem:[%s5 + $0x1a0] sm:$0xff]
      %v949 = vld [vmem:[%s5 + $0x1a8] sm:$0xff]
      %v950 = vld [vmem:[%s5 + $0x1b0] sm:$0xff]
      %v951 = vld [vmem:[%s5 + $0x1b8] sm:$0xff]
      %v952 = vld [vmem:[%s5 + $0x1c0] sm:$0xff]
      %v953 = vld [vmem:[%s5 + $0x1c8] sm:$0xff]
      %v954 = vld [vmem:[%s5 + $0x1d0] sm:$0xff]
      %v955 = vld [vmem:[%s5 + $0x1d8] sm:$0xff]
      %v956 = vld [vmem:[%s5 + $0x1e0] sm:$0xff]
      %v957 = vld [vmem:[%s5 + $0x1e8] sm:$0xff]
      %v958 = vld [vmem:[%s5 + $0x1f0] sm:$0xff]
      %v959 = vld [vmem:[%s5 + $0x1f8] sm:$0xff]
      %v960 = vld [vmem:[%s6] sm:$0xff]
      %v961 = vld [vmem:[%s6 + $0x8] sm:$0xff]
      %v962 = vld [vmem:[%s6 + $0x10] sm:$0xff]
      %v963 = vld [vmem:[%s6 + $0x18] sm:$0xff]
      %v964 = vld [vmem:[%s6 + $0x20] sm:$0xff]
      %v965 = vld [vmem:[%s6 + $0x28] sm:$0xff]
      %v966 = vld [vmem:[%s6 + $0x30] sm:$0xff]
      %v967 = vld [vmem:[%s6 + $0x38] sm:$0xff]
      %v968 = vld [vmem:[%s6 + $0x40] sm:$0xff]
      %v969 = vld [vmem:[%s6 + $0x48] sm:$0xff]
      %v970 = vld [vmem:[%s6 + $0x50] sm:$0xff]
      %v971 = vld [vmem:[%s6 + $0x58] sm:$0xff]
      %v972 = vld [vmem:[%s6 + $0x60] sm:$0xff]
      %v973 = vld [vmem:[%s6 + $0x68] sm:$0xff]
      %v974 = vld [vmem:[%s6 + $0x70] sm:$0xff]
      %v975 = vld [vmem:[%s6 + $0x78] sm:$0xff]
      %v976 = vld [vmem:[%s6 + $0x80] sm:$0xff]
      %v977 = vld [vmem:[%s6 + $0x88] sm:$0xff]
      %v978 = vld [vmem:[%s6 + $0x90] sm:$0xff]
      %v979 = vld [vmem:[%s6 + $0x98] sm:$0xff]
      %v980 = vld [vmem:[%s6 + $0xa0] sm:$0xff]
      %v981 = vld [vmem:[%s6 + $0xa8] sm:$0xff]
      %v982 = vld [vmem:[%s6 + $0xb0] sm:$0xff]
      %v983 = vld [vmem:[%s6 + $0xb8] sm:$0xff]
      %v984 = vld [vmem:[%s6 + $0xc0] sm:$0xff]
      %v985 = vld [vmem:[%s6 + $0xc8] sm:$0xff]
      %v986 = vld [vmem:[%s6 + $0xd0] sm:$0xff]
      %v987 = vld [vmem:[%s6 + $0xd8] sm:$0xff]
      %v988 = vld [vmem:[%s6 + $0xe0] sm:$0xff]
      %v989 = vld [vmem:[%s6 + $0xe8] sm:$0xff]
      %v990 = vld [vmem:[%s6 + $0xf0] sm:$0xff]
      %v991 = vld [vmem:[%s6 + $0xf8] sm:$0xff]
      %v992 = vld [vmem:[%s6 + $0x100] sm:$0xff]
      %v993 = vld [vmem:[%s6 + $0x108] sm:$0xff]
      %v994 = vld [vmem:[%s6 + $0x110] sm:$0xff]
      %v995 = vld [vmem:[%s6 + $0x118] sm:$0xff]
      %v996 = vld [vmem:[%s6 + $0x120] sm:$0xff]
      %v997 = vld [vmem:[%s6 + $0x128] sm:$0xff]
      %v998 = vld [vmem:[%s6 + $0x130] sm:$0xff]
      %v999 = vld [vmem:[%s6 + $0x138] sm:$0xff]
      %v1000 = vld [vmem:[%s6 + $0x140] sm:$0xff]
      %v1001 = vld [vmem:[%s6 + $0x148] sm:$0xff]
      %v1002 = vld [vmem:[%s6 + $0x150] sm:$0xff]
      %v1003 = vld [vmem:[%s6 + $0x158] sm:$0xff]
      %v1004 = vld [vmem:[%s6 + $0x160] sm:$0xff]
      %v1005 = vld [vmem:[%s6 + $0x168] sm:$0xff]
      %v1006 = vld [vmem:[%s6 + $0x170] sm:$0xff]
      %v1007 = vld [vmem:[%s6 + $0x178] sm:$0xff]
      %v1008 = vld [vmem:[%s6 + $0x180] sm:$0xff]
      %v1009 = vld [vmem:[%s6 + $0x188] sm:$0xff]
      %v1010 = vld [vmem:[%s6 + $0x190] sm:$0xff]
      %v1011 = vld [vmem:[%s6 + $0x198] sm:$0xff]
      %v1012 = vld [vmem:[%s6 + $0x1a0] sm:$0xff]
      %v1013 = vld [vmem:[%s6 + $0x1a8] sm:$0xff]
      %v1014 = vld [vmem:[%s6 + $0x1b0] sm:$0xff]
      %v1015 = vld [vmem:[%s6 + $0x1b8] sm:$0xff]
      %v1016 = vld [vmem:[%s6 + $0x1c0] sm:$0xff]
      %v1017 = vld [vmem:[%s6 + $0x1c8] sm:$0xff]
      %v1018 = vld [vmem:[%s6 + $0x1d0] sm:$0xff]
      %v1019 = vld [vmem:[%s6 + $0x1d8] sm:$0xff]
      %v1020 = vld [vmem:[%s6 + $0x1e0] sm:$0xff]
      %v1021 = vld [vmem:[%s6 + $0x1e8] sm:$0xff]
      %v1022 = vld [vmem:[%s6 + $0x1f0] sm:$0xff]
      %v1023 = vld [vmem:[%s6 + $0x1f8] sm:$0xff]
      %1024 = vmatprep.subr.mxu0 %v961
      %1025 = vmatpush1.msra.mxu0 %v960
      %1026 = vmatprep.subr.mxu0 %v963
      %1027 = vmatpush1.msra.mxu0 %v962
      %1028 = vmatprep.subr.mxu0 %v965
      %1029 = vmatpush1.msra.mxu0 %v964
      %1030 = vmatprep.subr.mxu0 %v967
      %1031 = vmatpush1.msra.mxu0 %v966
      %1032 = vmatprep.subr.mxu0 %v969
      %1033 = vmatpush1.msra.mxu0 %v968
      %1034 = vmatprep.subr.mxu0 %v971
      %1035 = vmatpush1.msra.mxu0 %v970
      %1036 = vmatprep.subr.mxu0 %v973
      %1037 = vmatpush1.msra.mxu0 %v972
      %1038 = vmatprep.subr.mxu0 %v975
      %1039 = vmatpush1.msra.mxu0 %v974
      %1040 = vmatprep.subr.mxu0 %v977
      %1041 = vmatpush1.msra.mxu0 %v976
      %1042 = vmatprep.subr.mxu0 %v979
      %1043 = vmatpush1.msra.mxu0 %v978
      %1044 = vmatprep.subr.mxu0 %v981
      %1045 = vmatpush1.msra.mxu0 %v980
      %1046 = vmatprep.subr.mxu0 %v983
      %1047 = vmatpush1.msra.mxu0 %v982
      %1048 = vmatprep.subr.mxu0 %v985
      %1049 = vmatpush1.msra.mxu0 %v984
      %1050 = vmatprep.subr.mxu0 %v987
      %1051 = vmatpush1.msra.mxu0 %v986
      %1052 = vmatprep.subr.mxu0 %v989
      %1053 = vmatpush1.msra.mxu0 %v988
      %1054 = vmatprep.subr.mxu0 %v991
      %1055 = vmatpush1.msra.mxu0 %v990
      %1056 = vmatprep.subr.mxu0 %v993
      %1057 = vmatpush1.msra.mxu0 %v992
      %1058 = vmatprep.subr.mxu0 %v995
      %1059 = vmatpush1.msra.mxu0 %v994
      %1060 = vmatprep.subr.mxu0 %v997
      %1061 = vmatpush1.msra.mxu0 %v996
      %1062 = vmatprep.subr.mxu0 %v999
      %1063 = vmatpush1.msra.mxu0 %v998
      %1064 = vmatprep.subr.mxu0 %v1001
      %1065 = vmatpush1.msra.mxu0 %v1000
      %1066 = vmatprep.subr.mxu0 %v1003
      %1067 = vmatpush1.msra.mxu0 %v1002
      %1068 = vmatprep.subr.mxu0 %v1005
      %1069 = vmatpush1.msra.mxu0 %v1004
      %1070 = vmatprep.subr.mxu0 %v1007
      %1071 = vmatpush1.msra.mxu0 %v1006
      %1072 = vmatprep.subr.mxu0 %v1009
      %1073 = vmatpush1.msra.mxu0 %v1008
      %1074 = vmatprep.subr.mxu0 %v1011
      %1075 = vmatpush1.msra.mxu0 %v1010
      %1076 = vmatprep.subr.mxu0 %v1013
      %1077 = vmatpush1.msra.mxu0 %v1012
      %1078 = vmatprep.subr.mxu0 %v1015
      %1079 = vmatpush1.msra.mxu0 %v1014
      %1080 = vmatprep.subr.mxu0 %v1017
      %1081 = vmatpush1.msra.mxu0 %v1016
      %1082 = vmatprep.subr.mxu0 %v1019
      %1083 = vmatpush1.msra.mxu0 %v1018
      %1084 = vmatprep.subr.mxu0 %v1021
      %1085 = vmatpush1.msra.mxu0 %v1020
      %1086 = vmatprep.subr.mxu0 %v1023
      %1087 = vmatpush1.msra.mxu0 %v1022
      %1088 = vmatprep.mubr.f32.mxu0 %v895
      %1089 = vmatmul.mubr.f32.gmra.mrb[0].mxu0 %v894
      %v1090 = vpop.f32.mrb[0].mxu0
      %v1091 = vadd.f32 0.0, %v1090
      %v1092 = vpop.f32.mrb[0].mxu0
      %v1093 = vadd.f32 0.0, %v1092
      %1094 = vdwg.mxu0
      %1095 = vmatprep.subr.mxu0 %v897
      %1096 = vmatpush1.msra.mxu0 %v896
      %1097 = vmatprep.subr.mxu0 %v899
      %1098 = vmatpush1.msra.mxu0 %v898
      %1099 = vmatprep.subr.mxu0 %v901
      %1100 = vmatpush1.msra.mxu0 %v900
      %1101 = vmatprep.subr.mxu0 %v903
      %1102 = vmatpush1.msra.mxu0 %v902
      %1103 = vmatprep.subr.mxu0 %v905
      %1104 = vmatpush1.msra.mxu0 %v904
      %1105 = vmatprep.subr.mxu0 %v907
      %1106 = vmatpush1.msra.mxu0 %v906
      %1107 = vmatprep.subr.mxu0 %v909
      %1108 = vmatpush1.msra.mxu0 %v908
      %1109 = vmatprep.subr.mxu0 %v911
      %1110 = vmatpush1.msra.mxu0 %v910
      %1111 = vmatprep.subr.mxu0 %v913
      %1112 = vmatpush1.msra.mxu0 %v912
      %1113 = vmatprep.subr.mxu0 %v915
      %1114 = vmatpush1.msra.mxu0 %v914
      %1115 = vmatprep.subr.mxu0 %v917
      %1116 = vmatpush1.msra.mxu0 %v916
      %1117 = vmatprep.subr.mxu0 %v919
      %1118 = vmatpush1.msra.mxu0 %v918
      %1119 = vmatprep.subr.mxu0 %v921
      %1120 = vmatpush1.msra.mxu0 %v920
      %1121 = vmatprep.subr.mxu0 %v923
      %1122 = vmatpush1.msra.mxu0 %v922
      %1123 = vmatprep.subr.mxu0 %v925
      %1124 = vmatpush1.msra.mxu0 %v924
      %1125 = vmatprep.subr.mxu0 %v927
      %1126 = vmatpush1.msra.mxu0 %v926
      %1127 = vmatprep.subr.mxu0 %v929
      %1128 = vmatpush1.msra.mxu0 %v928
      %1129 = vmatprep.subr.mxu0 %v931
      %1130 = vmatpush1.msra.mxu0 %v930
      %1131 = vmatprep.subr.mxu0 %v933
      %1132 = vmatpush1.msra.mxu0 %v932
      %1133 = vmatprep.subr.mxu0 %v935
      %1134 = vmatpush1.msra.mxu0 %v934
      %1135 = vmatprep.subr.mxu0 %v937
      %1136 = vmatpush1.msra.mxu0 %v936
      %1137 = vmatprep.subr.mxu0 %v939
      %1138 = vmatpush1.msra.mxu0 %v938
      %1139 = vmatprep.subr.mxu0 %v941
      %1140 = vmatpush1.msra.mxu0 %v940
      %1141 = vmatprep.subr.mxu0 %v943
      %1142 = vmatpush1.msra.mxu0 %v942
      %1143 = vmatprep.subr.mxu0 %v945
      %1144 = vmatpush1.msra.mxu0 %v944
      %1145 = vmatprep.subr.mxu0 %v947
      %1146 = vmatpush1.msra.mxu0 %v946
      %1147 = vmatprep.subr.mxu0 %v949
      %1148 = vmatpush1.msra.mxu0 %v948
      %1149 = vmatprep.subr.mxu0 %v951
      %1150 = vmatpush1.msra.mxu0 %v950
      %1151 = vmatprep.subr.mxu0 %v953
      %1152 = vmatpush1.msra.mxu0 %v952
      %1153 = vmatprep.subr.mxu0 %v955
      %1154 = vmatpush1.msra.mxu0 %v954
      %1155 = vmatprep.subr.mxu0 %v957
      %1156 = vmatpush1.msra.mxu0 %v956
      %1157 = vmatprep.subr.mxu0 %v959
      %1158 = vmatpush1.msra.mxu0 %v958
      %1159 = vmatprep.mubr.f32.mxu0 %v889
      %1160 = vmatmul.mubr.f32.gmra.mrb[0].mxu0 %v888
      %v1161 = vpop.f32.mrb[0].mxu0
      %v1162 = vadd.f32 %v1091, %v1161
      %v1163 = vpop.f32.mrb[0].mxu0
      %v1164 = vadd.f32 %v1093, %v1163
      %1165 = vdwg.mxu0
      %1166 = vst [vmem:[%s367] sm:$0xff] %v1162
      %1167 = vst [vmem:[%s367 + $0x8] sm:$0xff] %v1164
      %1168 = vst [vmem:[%s372] sm:$0xff] %v876
      %1169 = vst [vmem:[%s372 + $0x8] sm:$0xff] %v877
      %1170 = vst [vmem:[%s377] sm:$0xff] %v818
      %1171 = vst [vmem:[%s377 + $0x8] sm:$0xff] %v820
      %p1172 = scmp.lt.s32.totalorder %s21, 1
      %s1173 = scalar_select %p1172, %s21, 1
      %s1174 = smul.addr %s1173, 2
      %s1175 = smul.addr %s1174, 8
      %s1176 = scalar_lea.vmem %s7, %s1175
      %p1177 = scmp.lt.s32.totalorder %s21, 1
      %s1178 = scalar_select %p1177, %s21, 1
      %s1179 = smul.addr %s1178, 2
      %s1180 = smul.addr %s1179, 8
      %s1181 = scalar_lea.vmem %s8, %s1180
      %p1182 = scmp.lt.s32.totalorder %s21, 1
      %s1183 = scalar_select %p1182, %s21, 1
      %s1184 = smul.addr %s1183, 2
      %s1185 = smul.addr %s1184, 8
      %s1186 = scalar_lea.vmem %s9, %s1185
      // Predicated region
      $region49: #{adapter_conv_forward.3} parent=47 // pred_check
        %p1187 = pneg %p196
      $region50: #{adapter_conv_forward.3} parent=47 // pred_check_branch
        %1189 = sbr.rel (%p1187) target = $region52
      $region51: #{adapter_conv_forward.3} parent=47 // pred_region
        _
      $region52: #{adapter_conv_forward.3} parent=47 // pred_fallthru
        _
      // Predicated region
      $region53: #{adapter_conv_forward.3} parent=47 // pred_check
        %p1190 = pneg %p222
      $region54: #{adapter_conv_forward.3} parent=47 // pred_check_branch
        %1192 = sbr.rel (%p1190) target = $region56
      $region55: #{adapter_conv_forward.3} parent=47 // pred_region
        _
      $region56: #{adapter_conv_forward.3} parent=47 // pred_fallthru
        _
      // Predicated region
      $region57: #{adapter_conv_forward.3} parent=47 // pred_check
        %p1193 = pneg %p248
      $region58: #{adapter_conv_forward.3} parent=47 // pred_check_branch
        %1195 = sbr.rel (%p1193) target = $region60
      $region59: #{adapter_conv_forward.3} parent=47 // pred_region
        _
      $region60: #{adapter_conv_forward.3} parent=47 // pred_fallthru
        _
    $region48: #{adapter_conv_forward.3} parent=5 // pred_fallthru
      _
    %p1196 = scmp.le.s32.totalorder 2, %s16
    // Predicated region
    $region61: #{adapter_conv_forward.3} parent=5 // pred_check
      %p1197 = pneg %p1196
    $region62: #{adapter_conv_forward.3} parent=5 // pred_check_branch
      %1199 = sbr.rel (%p1197) target = $region64
    $region63: #{adapter_conv_forward.3} parent=5 // pred_region
      %s1200 = ssub.s32 %s16, 2
      // Predicated region
      $region65: #{adapter_conv_forward.3} parent=63 // pred_check
        %p1201 = pneg %p202
      $region66: #{adapter_conv_forward.3} parent=63 // pred_check_branch
        %1203 = sbr.rel (%p1201) target = $region68
      $region67: #{adapter_conv_forward.3} parent=63 // pred_region
        %p1204 = scmp.lt.s32.totalorder %s22, 1
        %s1205 = scalar_select %p1204, %s22, 1
        %s1206 = smul.addr %s1205, 2
        %s1207 = smul.addr %s1206, 8
        %s1208 = scalar_lea.vmem %s7, %s1207
      $region68: #{adapter_conv_forward.3} parent=63 // pred_fallthru
        _
      // Predicated region
      $region69: #{adapter_conv_forward.3} parent=63 // pred_check
        %p1209 = pneg %p228
      $region70: #{adapter_conv_forward.3} parent=63 // pred_check_branch
        %1211 = sbr.rel (%p1209) target = $region72
      $region71: #{adapter_conv_forward.3} parent=63 // pred_region
        %p1212 = scmp.lt.s32.totalorder %s22, 1
        %s1213 = scalar_select %p1212, %s22, 1
        %s1214 = smul.addr %s1213, 2
        %s1215 = smul.addr %s1214, 8
        %s1216 = scalar_lea.vmem %s8, %s1215
      $region72: #{adapter_conv_forward.3} parent=63 // pred_fallthru
        _
      // Predicated region
      $region73: #{adapter_conv_forward.3} parent=63 // pred_check
        %p1217 = pneg %p254
      $region74: #{adapter_conv_forward.3} parent=63 // pred_check_branch
        %1219 = sbr.rel (%p1217) target = $region76
      $region75: #{adapter_conv_forward.3} parent=63 // pred_region
        %p1220 = scmp.lt.s32.totalorder %s22, 1
        %s1221 = scalar_select %p1220, %s22, 1
        %s1222 = smul.addr %s1221, 2
        %s1223 = smul.addr %s1222, 8
        %s1224 = scalar_lea.vmem %s9, %s1223
      $region76: #{adapter_conv_forward.3} parent=63 // pred_fallthru
        _
    $region64: #{adapter_conv_forward.3} parent=5 // pred_fallthru
      _
  $region6: #{adapter_conv_forward.3} parent=0 // loop_footer
    %s20 = sadd.s32 1, %s16
  $region7: #{adapter_conv_forward.3} parent=0 // loop_footer_branch
    %15 = sbr.rel target = $region3
  $region8: #{adapter_conv_forward.3} parent=0 // loop_exit
    _

</llo_original>
